<compile_context>
chip_gen: v5e
topology: v5e:2x2
jax: 0.10.0
libtpu: 0.0.40
codegen_flags: <defaults>
</compile_context>

<pallas_src>
import functools

import numpy as np
import jax
import jax.numpy as jnp
from jax.experimental import pallas as pl
from jax.experimental.pallas import tpu as pltpu


_BIAS_PAD = 8            # rows of the all-ones block appended to each stack
                         # (keeps the contraction dim / sublane concat 8-aligned;
                         #  only its first column in the weight carries the bias)
_SHIFT_D = (-2, -1, 1, 2)   # W-offsets needed by the 3-tap and 5-tap convs


# ----------------------------------------------------------------------------
# The single fused kernel
# ----------------------------------------------------------------------------
def _fused_kernel(x_ref, f_ref, w_ref, o_ref, *, ops, B, C_in, H, W):
    """Whole HeadBS1 net in one kernel body.  `ops` is a static layer list."""
    L = B * W
    f = f_ref[0]

    # ---- hoisted per-kernel constants (reused by every layer) --------------
    w_pos = jax.lax.broadcasted_iota(jnp.int32, (1, L), 1) % W    # lane -> w
    masks = {d: ((w_pos + d >= 0) & (w_pos + d < W)).astype(jnp.float32)
             for d in _SHIFT_D}
    ones_blk = jnp.ones((_BIAS_PAD, L), jnp.float32)

    def lane_shift(a, d):
        # s[:, l] = a[:, l + d] if 0 <= (l % W) + d < W else 0.
        # Lane slice + zero fill + mask multiply: VPU/XLU only, no MXU.
        r = a.shape[0]
        z = jnp.zeros((r, abs(d)), jnp.float32)
        if d > 0:
            s = jnp.concatenate([a[:, d:], z], axis=1)
        else:
            s = jnp.concatenate([z, a[:, :L + d]], axis=1)
        return s * masks[d]

    def conv(a, taps, r_in, r_out, off):
        # 'same' conv over W (and, via the banded weights, over H) as ONE
        # matmul:  (r_out, taps*r_in + PAD) @ (taps*r_in + PAD, L).
        c = taps // 2
        parts = [a if t == c else lane_shift(a, t - c) for t in range(taps)]
        parts.append(ones_blk)                         # bias via ones block
        stack = jnp.concatenate(parts, axis=0)
        k = taps * r_in + _BIAS_PAD
        m = w_ref[off:off + r_out, 0:k]                # static slice, 8-aligned
        return jnp.dot(m, stack, preferred_element_type=jnp.float32)

    # ---- NCHW input -> rows = c*H + h, lanes = b*W + w (in-kernel) ----------
    act = jnp.concatenate(
        [jnp.concatenate([x_ref[b, c] for b in range(B)], axis=1)
         for c in range(C_in)], axis=0).astype(jnp.float32)

    for op in ops:
        kind = op["kind"]
        if kind == "conv":                             # ConvBlock = Conv + ReLU
            act = conv(act, op["taps"], op["rin"], op["rout"], op["off"])
            if op["relu"]:
                act = jnp.maximum(act, 0.0)
        elif kind == "resnet":                         # ResnetBlock
            if op["proj"] is not None:                 # 1x1 projection, no bias
                po = op["proj"]
                mp = w_ref[po:po + op["rout"], 0:op["rin"]]
                skip = jnp.dot(mp, act, preferred_element_type=jnp.float32)
            else:
                skip = act
            t1 = jnp.maximum(
                conv(act, op["taps"], op["rin"], op["rout"], op["off1"]), 0.0)
            act = jnp.maximum(
                conv(t1, op["taps"], op["rout"], op["rout"], op["off2"]) + skip,
                0.0)
        else:                                          # "scale": x *= self.f
            act = act * f

    # ---- (ch1, B*W) -> (B, ch1, W) output, in-kernel ------------------------
    for b in range(B):
        o_ref[b] = act[:, b * W:(b + 1) * W].astype(o_ref.dtype)


# ----------------------------------------------------------------------------
# Host-side weight packing: fold the H-dim conv into banded matmul operands,
# concatenate taps + bias column, and pack everything into ONE buffer.
# ----------------------------------------------------------------------------
def _band2d(w, H):
    """(kh,kw,Cin,Cout) 'same' conv weight -> list of kw (Cout*H, Cin*H) banded
    matrices: mats[j][co*H+ho, ci*H+hi] = w[hi-ho+kh//2, j, ci, co]."""
    kh, kw, _, _ = w.shape
    a = np.arange(H)
    mats = []
    for j in range(kw):
        m = None
        for i in range(kh):
            dh = i - kh // 2
            band = jnp.asarray(a[None, :] == a[:, None] + dh, jnp.float32)
            term = jnp.kron(w[i, j].T, band)
            m = term if m is None else m + term
        mats.append(m)
    return mats


def _cat_taps_bias(mats, bias):
    """[M_0 | ... | M_{k-1} | bias block]: (r_out, k*r_in + _BIAS_PAD)."""
    r_out = mats[0].shape[0]
    pad = jnp.zeros((r_out, _BIAS_PAD), jnp.float32)
    pad = pad.at[:, 0].set(jnp.asarray(bias, jnp.float32))
    return jnp.concatenate(list(mats) + [pad], axis=1)


def pack_headbs1_params(params, *, H):
    """HeadBS1 params -> (static op list, single packed weight buffer, f, ch1)."""
    ops, mats = [], []
    row_off = [0]

    def add(m):
        m = jnp.asarray(m, jnp.float32)
        o = row_off[0]
        mats.append(m)
        row_off[0] += int(m.shape[0])
        return o

    def conv2d(w, b):
        cin, cout = int(w.shape[2]), int(w.shape[3])
        ops.append(dict(kind="conv", taps=int(w.shape[1]), rin=cin * H,
                        rout=cout * H, relu=True,
                        off=add(_cat_taps_bias(_band2d(w, H),
                                               jnp.repeat(b, H)))))

    def resnet2d(layer):
        w1, w2 = layer["w1"], layer["w2"]
        cin, cout = int(w1.shape[2]), int(w1.shape[3])
        o1 = add(_cat_taps_bias(_band2d(w1, H), jnp.repeat(layer["b1"], H)))
        o2 = add(_cat_taps_bias(_band2d(w2, H), jnp.repeat(layer["b2"], H)))
        proj = None
        if "wp" in layer:                  # 1x1 projection (channel change)
            proj = add(jnp.kron(layer["wp"][0, 0].T,
                                jnp.eye(H, dtype=jnp.float32)))
        ops.append(dict(kind="resnet", taps=int(w1.shape[1]), rin=cin * H,
                        rout=cout * H, off1=o1, off2=o2, proj=proj))

    def conv1d(w, b):
        k, cin, cout = (int(s) for s in w.shape)
        ops.append(dict(kind="conv", taps=k, rin=cin, rout=cout, relu=True,
                        off=add(_cat_taps_bias([w[t].T for t in range(k)], b))))

    def resnet1d(layer):
        w1, w2 = layer["w1"], layer["w2"]
        k, cin, cout = (int(s) for s in w1.shape)
        o1 = add(_cat_taps_bias([w1[t].T for t in range(k)], layer["b1"]))
        o2 = add(_cat_taps_bias([w2[t].T for t in range(k)], layer["b2"]))
        ops.append(dict(kind="resnet", taps=k, rin=cin, rout=cout,
                        off1=o1, off2=o2, proj=None))

    # pre_conv (2-D stage)
    for layer in params["pre_conv"]:
        if layer["kind"] == 0:
            conv2d(layer["w"], layer["b"])
        else:
            resnet2d(layer)
    # PyTorch reshape (B,C,H,W)->(B,C*H,W) is the identity in this layout.
    conv1d(params["mid"]["w"], params["mid"]["b"])     # mid ConvBlock (1-D k=3)
    ops.append(dict(kind="scale"))                     # x *= self.f
    for layer in params["post_conv"]:                  # post ResnetBlocks (k=5)
        resnet1d(layer)
    ops.append(dict(kind="scale"))                     # x2 *= self.f

    # Single contiguous buffer (one DMA): rows 8-aligned, columns padded to max.
    max_cols = max(int(m.shape[1]) for m in mats)
    w_buf = jnp.concatenate(
        [jnp.pad(m, ((0, 0), (0, max_cols - int(m.shape[1])))) for m in mats],
        axis=0)

    f = params["f"].reshape(1).astype(jnp.float32)
    out_ch = int(params["mid"]["w"].shape[2])          # ch1 (= 8)
    return tuple(ops), w_buf, f, out_ch


# ----------------------------------------------------------------------------
# Forward pass (matches HeadBS1.forward)
# ----------------------------------------------------------------------------
def headbs1_forward(packed, x):
    """x: (B, bs_channels, H, W) NCHW -> (B, ch1, W)."""
    ops, w_buf, f, out_ch = packed
    B, cin, H, W = (int(s) for s in x.shape)
    kernel = functools.partial(_fused_kernel, ops=ops, B=B, C_in=cin, H=H, W=W)
    return pl.pallas_call(
        kernel,
        out_shape=jax.ShapeDtypeStruct((B, out_ch, W), jnp.float32),
        in_specs=[pl.BlockSpec(memory_space=pltpu.MemorySpace.VMEM),   # x NCHW
                  pl.BlockSpec(memory_space=pltpu.MemorySpace.SMEM),   # f scalar
                  pl.BlockSpec(memory_space=pltpu.MemorySpace.VMEM)],  # weights
        out_specs=pl.BlockSpec(memory_space=pltpu.MemorySpace.VMEM),
    )(x, f, w_buf)


# ----------------------------------------------------------------------------
# Deterministic parameter construction mirroring HeadBS1.__init__
# (bs_channels=2, pre_conv_channels=[4,8], pre_residuals=1,
#  pow_2_channels=False -> ch1=8, post_residuals=2).
# ----------------------------------------------------------------------------
def _conv2d_params(key, kh, kw, cin, cout, use_bias=True):
    kw_, kb_ = jax.random.split(key)
    w = 0.1 * jax.random.normal(kw_, (kh, kw, cin, cout), jnp.float32)
    b = (0.1 * jax.random.normal(kb_, (cout,), jnp.float32)
         if use_bias else jnp.zeros((cout,), jnp.float32))
    return w, b


def _conv1d_params(key, k, cin, cout):
    kw_, kb_ = jax.random.split(key)
    w = 0.1 * jax.random.normal(kw_, (k, cin, cout), jnp.float32)
    b = 0.1 * jax.random.normal(kb_, (cout,), jnp.float32)
    return w, b


def init_headbs1_params(key, *, bs_channels, pre_conv_channels, pre_residuals,
                        input_len, post_residuals):
    keys = iter(jax.random.split(key, 128))

    def resnet2d(cin, cout):
        w1, b1 = _conv2d_params(next(keys), 3, 3, cin, cout)
        w2, b2 = _conv2d_params(next(keys), 3, 3, cout, cout)
        layer = {"kind": 1, "w1": w1, "b1": b1, "w2": w2, "b2": b2}
        if cin != cout:
            wp, _ = _conv2d_params(next(keys), 1, 1, cin, cout, use_bias=False)
            layer["wp"] = wp
        return layer

    pre = []
    c0 = pre_conv_channels[0]
    w, b = _conv2d_params(next(keys), 3, 3, bs_channels, c0)
    pre.append({"kind": 0, "w": w, "b": b})                 # ConvBlock
    for _ in range(pre_residuals):
        pre.append(resnet2d(c0, c0))
    for i in range(len(pre_conv_channels) - 1):
        in_c, out_c = pre_conv_channels[i], pre_conv_channels[i + 1]
        pre.append(resnet2d(in_c, out_c))
        for _ in range(pre_residuals):
            pre.append(resnet2d(out_c, out_c))

    # mid (pow_2_channels=False): ConvBlock(ch0, 8, k=3, padding=1, one_d=True)
    ch0 = pre_conv_channels[-1] * input_len
    ch1 = 8
    wm, bm = _conv1d_params(next(keys), 3, ch0, ch1)
    mid = {"w": wm, "b": bm}

    # post_conv: post_residuals x ResnetBlock(ch1, ch1, one_d=True, kernel_size=5)
    post = []
    for _ in range(post_residuals):
        w1, b1 = _conv1d_params(next(keys), 5, ch1, ch1)
        w2, b2 = _conv1d_params(next(keys), 5, ch1, ch1)
        post.append({"w1": w1, "b1": b1, "w2": w2, "b2": b2})

    f = jnp.ones((1,), jnp.float32)                         # self.f = ones(1)
    return {"pre_conv": pre, "mid": mid, "post_conv": post, "f": f}


if __name__ == "__main__":
    key = jax.random.PRNGKey(0)
    kx, kp = jax.random.split(key)

    B, H, W = 2, 8, 16          # input_len == H == 8
    bs_channels = 2
    x = jax.random.normal(kx, (B, bs_channels, H, W), jnp.float32)

    params = init_headbs1_params(
        kp, bs_channels=bs_channels, pre_conv_channels=(4, 8),
        pre_residuals=1, input_len=H, post_residuals=2)

    packed = pack_headbs1_params(params, H=H)   # one-time weight preprocessing
    out = headbs1_forward(packed, x)
    out = jax.block_until_ready(out)

    assert out.shape == (B, 8, W), out.shape
    assert bool(jnp.all(jnp.isfinite(out)))
    print("KERNEL_OK")
</pallas_src>

<mosaic_0001>
module attributes {stable_mosaic.version = 11 : i64} {
  func.func @_fused_kernel(%arg0: memref<2x2x8x16xf32, #tpu.memory_space<vmem>>, %arg1: memref<1xf32, #tpu.memory_space<smem>>, %arg2: memref<456x200xf32, #tpu.memory_space<vmem>>, %arg3: memref<2x8x16xf32, #tpu.memory_space<vmem>>) attributes {dimension_semantics = [], scalar_prefetch = 0 : i64, scratch_operands = 0 : i64, tpu.core_type = #tpu.core_type<tc>} {
    %c0 = arith.constant 0 : index
    %0 = memref.load %arg1[%c0] : memref<1xf32, #tpu.memory_space<smem>>
    %1 = tpu.iota {dimensions = array<i32: 1>} : vector<1x32xi32>
    %c16_i32 = arith.constant 16 : i32
    %c0_i32 = arith.constant 0 : i32
    %2 = arith.cmpi eq, %c16_i32, %c0_i32 : i32
    %c1_i32 = arith.constant 1 : i32
    %3 = arith.select %2, %c1_i32, %c16_i32 : i32
    %4 = vector.broadcast %3 : i32 to vector<1x32xi32>
    %5 = arith.remsi %1, %4 : vector<1x32xi32>
    %c0_i32_0 = arith.constant 0 : i32
    %6 = vector.broadcast %c0_i32_0 : i32 to vector<1x32xi32>
    %7 = arith.cmpi ne, %5, %6 : vector<1x32xi32>
    %c0_i32_1 = arith.constant 0 : i32
    %8 = vector.broadcast %c0_i32_1 : i32 to vector<1x32xi32>
    %9 = arith.cmpi slt, %5, %8 : vector<1x32xi32>
    %c0_i32_2 = arith.constant 0 : i32
    %10 = arith.cmpi slt, %3, %c0_i32_2 : i32
    %11 = vector.broadcast %10 : i1 to vector<1x32xi1>
    %12 = vector.broadcast %11 : vector<1x32xi1> to vector<1x32xi1>
    %13 = arith.xori %9, %12 : vector<1x32xi1>
    %14 = arith.andi %13, %7 : vector<1x32xi1>
    %15 = vector.broadcast %3 : i32 to vector<1x32xi32>
    %16 = arith.addi %5, %15 : vector<1x32xi32>
    %17 = arith.select %14, %16, %5 : vector<1x32xi1>, vector<1x32xi32>
    %c-2_i32 = arith.constant -2 : i32
    %18 = vector.broadcast %c-2_i32 : i32 to vector<1x32xi32>
    %19 = arith.addi %17, %18 : vector<1x32xi32>
    %c0_i32_3 = arith.constant 0 : i32
    %20 = vector.broadcast %c0_i32_3 : i32 to vector<1x32xi32>
    %21 = arith.cmpi sge, %19, %20 : vector<1x32xi32>
    %c-2_i32_4 = arith.constant -2 : i32
    %22 = vector.broadcast %c-2_i32_4 : i32 to vector<1x32xi32>
    %23 = arith.addi %17, %22 : vector<1x32xi32>
    %c16_i32_5 = arith.constant 16 : i32
    %24 = vector.broadcast %c16_i32_5 : i32 to vector<1x32xi32>
    %25 = arith.cmpi slt, %23, %24 : vector<1x32xi32>
    %26 = arith.andi %21, %25 : vector<1x32xi1>
    %27 = arith.extui %26 : vector<1x32xi1> to vector<1x32xi32>
    %28 = arith.sitofp %27 : vector<1x32xi32> to vector<1x32xf32>
    %c-1_i32 = arith.constant -1 : i32
    %29 = vector.broadcast %c-1_i32 : i32 to vector<1x32xi32>
    %30 = arith.addi %17, %29 : vector<1x32xi32>
    %c0_i32_6 = arith.constant 0 : i32
    %31 = vector.broadcast %c0_i32_6 : i32 to vector<1x32xi32>
    %32 = arith.cmpi sge, %30, %31 : vector<1x32xi32>
    %c-1_i32_7 = arith.constant -1 : i32
    %33 = vector.broadcast %c-1_i32_7 : i32 to vector<1x32xi32>
    %34 = arith.addi %17, %33 : vector<1x32xi32>
    %c16_i32_8 = arith.constant 16 : i32
    %35 = vector.broadcast %c16_i32_8 : i32 to vector<1x32xi32>
    %36 = arith.cmpi slt, %34, %35 : vector<1x32xi32>
    %37 = arith.andi %32, %36 : vector<1x32xi1>
    %38 = arith.extui %37 : vector<1x32xi1> to vector<1x32xi32>
    %39 = arith.sitofp %38 : vector<1x32xi32> to vector<1x32xf32>
    %c1_i32_9 = arith.constant 1 : i32
    %40 = vector.broadcast %c1_i32_9 : i32 to vector<1x32xi32>
    %41 = arith.addi %17, %40 : vector<1x32xi32>
    %c0_i32_10 = arith.constant 0 : i32
    %42 = vector.broadcast %c0_i32_10 : i32 to vector<1x32xi32>
    %43 = arith.cmpi sge, %41, %42 : vector<1x32xi32>
    %c1_i32_11 = arith.constant 1 : i32
    %44 = vector.broadcast %c1_i32_11 : i32 to vector<1x32xi32>
    %45 = arith.addi %17, %44 : vector<1x32xi32>
    %c16_i32_12 = arith.constant 16 : i32
    %46 = vector.broadcast %c16_i32_12 : i32 to vector<1x32xi32>
    %47 = arith.cmpi slt, %45, %46 : vector<1x32xi32>
    %48 = arith.andi %43, %47 : vector<1x32xi1>
    %49 = arith.extui %48 : vector<1x32xi1> to vector<1x32xi32>
    %50 = arith.sitofp %49 : vector<1x32xi32> to vector<1x32xf32>
    %c2_i32 = arith.constant 2 : i32
    %51 = vector.broadcast %c2_i32 : i32 to vector<1x32xi32>
    %52 = arith.addi %17, %51 : vector<1x32xi32>
    %c0_i32_13 = arith.constant 0 : i32
    %53 = vector.broadcast %c0_i32_13 : i32 to vector<1x32xi32>
    %54 = arith.cmpi sge, %52, %53 : vector<1x32xi32>
    %c2_i32_14 = arith.constant 2 : i32
    %55 = vector.broadcast %c2_i32_14 : i32 to vector<1x32xi32>
    %56 = arith.addi %17, %55 : vector<1x32xi32>
    %c16_i32_15 = arith.constant 16 : i32
    %57 = vector.broadcast %c16_i32_15 : i32 to vector<1x32xi32>
    %58 = arith.cmpi slt, %56, %57 : vector<1x32xi32>
    %59 = arith.andi %54, %58 : vector<1x32xi1>
    %60 = arith.extui %59 : vector<1x32xi1> to vector<1x32xi32>
    %61 = arith.sitofp %60 : vector<1x32xi32> to vector<1x32xf32>
    %cst = arith.constant 1.000000e+00 : f32
    %62 = vector.broadcast %cst : f32 to vector<8x32xf32>
    %c0_16 = arith.constant 0 : index
    %c0_17 = arith.constant 0 : index
    %c0_18 = arith.constant 0 : index
    %c0_19 = arith.constant 0 : index
    %63 = vector.load %arg0[%c0_16, %c0_17, %c0_18, %c0_19] : memref<2x2x8x16xf32, #tpu.memory_space<vmem>>, vector<1x1x8x16xf32>
    %64 = vector.shape_cast %63 : vector<1x1x8x16xf32> to vector<8x16xf32>
    %c1 = arith.constant 1 : index
    %c0_20 = arith.constant 0 : index
    %c0_21 = arith.constant 0 : index
    %c0_22 = arith.constant 0 : index
    %65 = vector.load %arg0[%c1, %c0_20, %c0_21, %c0_22] : memref<2x2x8x16xf32, #tpu.memory_space<vmem>>, vector<1x1x8x16xf32>
    %66 = vector.shape_cast %65 : vector<1x1x8x16xf32> to vector<8x16xf32>
    %67 = tpu.concatenate %64, %66 in 1 : vector<8x16xf32>, vector<8x16xf32> -> vector<8x32xf32>
    %c0_23 = arith.constant 0 : index
    %c1_24 = arith.constant 1 : index
    %c0_25 = arith.constant 0 : index
    %c0_26 = arith.constant 0 : index
    %68 = vector.load %arg0[%c0_23, %c1_24, %c0_25, %c0_26] : memref<2x2x8x16xf32, #tpu.memory_space<vmem>>, vector<1x1x8x16xf32>
    %69 = vector.shape_cast %68 : vector<1x1x8x16xf32> to vector<8x16xf32>
    %c1_27 = arith.constant 1 : index
    %c1_28 = arith.constant 1 : index
    %c0_29 = arith.constant 0 : index
    %c0_30 = arith.constant 0 : index
    %70 = vector.load %arg0[%c1_27, %c1_28, %c0_29, %c0_30] : memref<2x2x8x16xf32, #tpu.memory_space<vmem>>, vector<1x1x8x16xf32>
    %71 = vector.shape_cast %70 : vector<1x1x8x16xf32> to vector<8x16xf32>
    %72 = tpu.concatenate %69, %71 in 1 : vector<8x16xf32>, vector<8x16xf32> -> vector<8x32xf32>
    %73 = tpu.concatenate %67, %72 in 0 : vector<8x32xf32>, vector<8x32xf32> -> vector<16x32xf32>
    %cst_31 = arith.constant 0.000000e+00 : f32
    %74 = vector.broadcast %cst_31 : f32 to vector<16x1xf32>
    %75 = vector.extract_strided_slice %73 {offsets = [0, 0], sizes = [16, 31], strides = [1, 1]} : vector<16x32xf32> to vector<16x31xf32>
    %76 = tpu.concatenate %74, %75 in 1 : vector<16x1xf32>, vector<16x31xf32> -> vector<16x32xf32>
    %77 = vector.broadcast %39 : vector<1x32xf32> to vector<16x32xf32>
    %78 = arith.mulf %76, %77 : vector<16x32xf32>
    %cst_32 = arith.constant 0.000000e+00 : f32
    %79 = vector.broadcast %cst_32 : f32 to vector<16x1xf32>
    %80 = vector.extract_strided_slice %73 {offsets = [0, 1], sizes = [16, 31], strides = [1, 1]} : vector<16x32xf32> to vector<16x31xf32>
    %81 = tpu.concatenate %80, %79 in 1 : vector<16x31xf32>, vector<16x1xf32> -> vector<16x32xf32>
    %82 = vector.broadcast %50 : vector<1x32xf32> to vector<16x32xf32>
    %83 = arith.mulf %81, %82 : vector<16x32xf32>
    %84 = tpu.concatenate %78, %73, %83, %62 in 0 : vector<16x32xf32>, vector<16x32xf32>, vector<16x32xf32>, vector<8x32xf32> -> vector<56x32xf32>
    %c0_33 = arith.constant 0 : index
    %c0_34 = arith.constant 0 : index
    %85 = vector.load %arg2[%c0_33, %c0_34] : memref<456x200xf32, #tpu.memory_space<vmem>>, vector<32x56xf32>
    %cst_35 = arith.constant dense<0.000000e+00> : vector<32x32xf32>
    %86 = tpu.matmul %85, %84, %cst_35 {dimension_numbers = #tpu.dot_dimension_numbers<[1], [0], [0], [1], [0, 0, 1, 1], [], []>} : vector<32x56xf32>, vector<56x32xf32>, vector<32x32xf32> -> vector<32x32xf32>
    %cst_36 = arith.constant 0.000000e+00 : f32
    %87 = vector.broadcast %cst_36 : f32 to vector<32x32xf32>
    %88 = arith.maximumf %86, %87 : vector<32x32xf32>
    %cst_37 = arith.constant 0.000000e+00 : f32
    %89 = vector.broadcast %cst_37 : f32 to vector<32x1xf32>
    %90 = vector.extract_strided_slice %88 {offsets = [0, 0], sizes = [32, 31], strides = [1, 1]} : vector<32x32xf32> to vector<32x31xf32>
    %91 = tpu.concatenate %89, %90 in 1 : vector<32x1xf32>, vector<32x31xf32> -> vector<32x32xf32>
    %92 = vector.broadcast %39 : vector<1x32xf32> to vector<32x32xf32>
    %93 = arith.mulf %91, %92 : vector<32x32xf32>
    %cst_38 = arith.constant 0.000000e+00 : f32
    %94 = vector.broadcast %cst_38 : f32 to vector<32x1xf32>
    %95 = vector.extract_strided_slice %88 {offsets = [0, 1], sizes = [32, 31], strides = [1, 1]} : vector<32x32xf32> to vector<32x31xf32>
    %96 = tpu.concatenate %95, %94 in 1 : vector<32x31xf32>, vector<32x1xf32> -> vector<32x32xf32>
    %97 = vector.broadcast %50 : vector<1x32xf32> to vector<32x32xf32>
    %98 = arith.mulf %96, %97 : vector<32x32xf32>
    %99 = tpu.concatenate %93, %88, %98, %62 in 0 : vector<32x32xf32>, vector<32x32xf32>, vector<32x32xf32>, vector<8x32xf32> -> vector<104x32xf32>
    %c32 = arith.constant 32 : index
    %c0_39 = arith.constant 0 : index
    %100 = vector.load %arg2[%c32, %c0_39] : memref<456x200xf32, #tpu.memory_space<vmem>>, vector<32x104xf32>
    %cst_40 = arith.constant dense<0.000000e+00> : vector<32x32xf32>
    %101 = tpu.matmul %100, %99, %cst_40 {dimension_numbers = #tpu.dot_dimension_numbers<[1], [0], [0], [1], [0, 0, 1, 1], [], []>} : vector<32x104xf32>, vector<104x32xf32>, vector<32x32xf32> -> vector<32x32xf32>
    %cst_41 = arith.constant 0.000000e+00 : f32
    %102 = vector.broadcast %cst_41 : f32 to vector<32x32xf32>
    %103 = arith.maximumf %101, %102 : vector<32x32xf32>
    %cst_42 = arith.constant 0.000000e+00 : f32
    %104 = vector.broadcast %cst_42 : f32 to vector<32x1xf32>
    %105 = vector.extract_strided_slice %103 {offsets = [0, 0], sizes = [32, 31], strides = [1, 1]} : vector<32x32xf32> to vector<32x31xf32>
    %106 = tpu.concatenate %104, %105 in 1 : vector<32x1xf32>, vector<32x31xf32> -> vector<32x32xf32>
    %107 = vector.broadcast %39 : vector<1x32xf32> to vector<32x32xf32>
    %108 = arith.mulf %106, %107 : vector<32x32xf32>
    %cst_43 = arith.constant 0.000000e+00 : f32
    %109 = vector.broadcast %cst_43 : f32 to vector<32x1xf32>
    %110 = vector.extract_strided_slice %103 {offsets = [0, 1], sizes = [32, 31], strides = [1, 1]} : vector<32x32xf32> to vector<32x31xf32>
    %111 = tpu.concatenate %110, %109 in 1 : vector<32x31xf32>, vector<32x1xf32> -> vector<32x32xf32>
    %112 = vector.broadcast %50 : vector<1x32xf32> to vector<32x32xf32>
    %113 = arith.mulf %111, %112 : vector<32x32xf32>
    %114 = tpu.concatenate %108, %103, %113, %62 in 0 : vector<32x32xf32>, vector<32x32xf32>, vector<32x32xf32>, vector<8x32xf32> -> vector<104x32xf32>
    %c64 = arith.constant 64 : index
    %c0_44 = arith.constant 0 : index
    %115 = vector.load %arg2[%c64, %c0_44] : memref<456x200xf32, #tpu.memory_space<vmem>>, vector<32x104xf32>
    %cst_45 = arith.constant dense<0.000000e+00> : vector<32x32xf32>
    %116 = tpu.matmul %115, %114, %cst_45 {dimension_numbers = #tpu.dot_dimension_numbers<[1], [0], [0], [1], [0, 0, 1, 1], [], []>} : vector<32x104xf32>, vector<104x32xf32>, vector<32x32xf32> -> vector<32x32xf32>
    %117 = arith.addf %116, %88 : vector<32x32xf32>
    %cst_46 = arith.constant 0.000000e+00 : f32
    %118 = vector.broadcast %cst_46 : f32 to vector<32x32xf32>
    %119 = arith.maximumf %117, %118 : vector<32x32xf32>
    %c224 = arith.constant 224 : index
    %c0_47 = arith.constant 0 : index
    %120 = vector.load %arg2[%c224, %c0_47] : memref<456x200xf32, #tpu.memory_space<vmem>>, vector<64x32xf32>
    %cst_48 = arith.constant dense<0.000000e+00> : vector<64x32xf32>
    %121 = tpu.matmul %120, %119, %cst_48 {dimension_numbers = #tpu.dot_dimension_numbers<[1], [0], [0], [1], [0, 0, 1, 1], [], []>} : vector<64x32xf32>, vector<32x32xf32>, vector<64x32xf32> -> vector<64x32xf32>
    %cst_49 = arith.constant 0.000000e+00 : f32
    %122 = vector.broadcast %cst_49 : f32 to vector<32x1xf32>
    %123 = vector.extract_strided_slice %119 {offsets = [0, 0], sizes = [32, 31], strides = [1, 1]} : vector<32x32xf32> to vector<32x31xf32>
    %124 = tpu.concatenate %122, %123 in 1 : vector<32x1xf32>, vector<32x31xf32> -> vector<32x32xf32>
    %125 = vector.broadcast %39 : vector<1x32xf32> to vector<32x32xf32>
    %126 = arith.mulf %124, %125 : vector<32x32xf32>
    %cst_50 = arith.constant 0.000000e+00 : f32
    %127 = vector.broadcast %cst_50 : f32 to vector<32x1xf32>
    %128 = vector.extract_strided_slice %119 {offsets = [0, 1], sizes = [32, 31], strides = [1, 1]} : vector<32x32xf32> to vector<32x31xf32>
    %129 = tpu.concatenate %128, %127 in 1 : vector<32x31xf32>, vector<32x1xf32> -> vector<32x32xf32>
    %130 = vector.broadcast %50 : vector<1x32xf32> to vector<32x32xf32>
    %131 = arith.mulf %129, %130 : vector<32x32xf32>
    %132 = tpu.concatenate %126, %119, %131, %62 in 0 : vector<32x32xf32>, vector<32x32xf32>, vector<32x32xf32>, vector<8x32xf32> -> vector<104x32xf32>
    %c96 = arith.constant 96 : index
    %c0_51 = arith.constant 0 : index
    %133 = vector.load %arg2[%c96, %c0_51] : memref<456x200xf32, #tpu.memory_space<vmem>>, vector<64x104xf32>
    %cst_52 = arith.constant dense<0.000000e+00> : vector<64x32xf32>
    %134 = tpu.matmul %133, %132, %cst_52 {dimension_numbers = #tpu.dot_dimension_numbers<[1], [0], [0], [1], [0, 0, 1, 1], [], []>} : vector<64x104xf32>, vector<104x32xf32>, vector<64x32xf32> -> vector<64x32xf32>
    %cst_53 = arith.constant 0.000000e+00 : f32
    %135 = vector.broadcast %cst_53 : f32 to vector<64x32xf32>
    %136 = arith.maximumf %134, %135 : vector<64x32xf32>
    %cst_54 = arith.constant 0.000000e+00 : f32
    %137 = vector.broadcast %cst_54 : f32 to vector<64x1xf32>
    %138 = vector.extract_strided_slice %136 {offsets = [0, 0], sizes = [64, 31], strides = [1, 1]} : vector<64x32xf32> to vector<64x31xf32>
    %139 = tpu.concatenate %137, %138 in 1 : vector<64x1xf32>, vector<64x31xf32> -> vector<64x32xf32>
    %140 = vector.broadcast %39 : vector<1x32xf32> to vector<64x32xf32>
    %141 = arith.mulf %139, %140 : vector<64x32xf32>
    %cst_55 = arith.constant 0.000000e+00 : f32
    %142 = vector.broadcast %cst_55 : f32 to vector<64x1xf32>
    %143 = vector.extract_strided_slice %136 {offsets = [0, 1], sizes = [64, 31], strides = [1, 1]} : vector<64x32xf32> to vector<64x31xf32>
    %144 = tpu.concatenate %143, %142 in 1 : vector<64x31xf32>, vector<64x1xf32> -> vector<64x32xf32>
    %145 = vector.broadcast %50 : vector<1x32xf32> to vector<64x32xf32>
    %146 = arith.mulf %144, %145 : vector<64x32xf32>
    %147 = tpu.concatenate %141, %136, %146, %62 in 0 : vector<64x32xf32>, vector<64x32xf32>, vector<64x32xf32>, vector<8x32xf32> -> vector<200x32xf32>
    %c160 = arith.constant 160 : index
    %c0_56 = arith.constant 0 : index
    %148 = vector.load %arg2[%c160, %c0_56] : memref<456x200xf32, #tpu.memory_space<vmem>>, vector<64x200xf32>
    %cst_57 = arith.constant dense<0.000000e+00> : vector<64x32xf32>
    %149 = tpu.matmul %148, %147, %cst_57 {dimension_numbers = #tpu.dot_dimension_numbers<[1], [0], [0], [1], [0, 0, 1, 1], [], []>} : vector<64x200xf32>, vector<200x32xf32>, vector<64x32xf32> -> vector<64x32xf32>
    %150 = arith.addf %149, %121 : vector<64x32xf32>
    %cst_58 = arith.constant 0.000000e+00 : f32
    %151 = vector.broadcast %cst_58 : f32 to vector<64x32xf32>
    %152 = arith.maximumf %150, %151 : vector<64x32xf32>
    %cst_59 = arith.constant 0.000000e+00 : f32
    %153 = vector.broadcast %cst_59 : f32 to vector<64x1xf32>
    %154 = vector.extract_strided_slice %152 {offsets = [0, 0], sizes = [64, 31], strides = [1, 1]} : vector<64x32xf32> to vector<64x31xf32>
    %155 = tpu.concatenate %153, %154 in 1 : vector<64x1xf32>, vector<64x31xf32> -> vector<64x32xf32>
    %156 = vector.broadcast %39 : vector<1x32xf32> to vector<64x32xf32>
    %157 = arith.mulf %155, %156 : vector<64x32xf32>
    %cst_60 = arith.constant 0.000000e+00 : f32
    %158 = vector.broadcast %cst_60 : f32 to vector<64x1xf32>
    %159 = vector.extract_strided_slice %152 {offsets = [0, 1], sizes = [64, 31], strides = [1, 1]} : vector<64x32xf32> to vector<64x31xf32>
    %160 = tpu.concatenate %159, %158 in 1 : vector<64x31xf32>, vector<64x1xf32> -> vector<64x32xf32>
    %161 = vector.broadcast %50 : vector<1x32xf32> to vector<64x32xf32>
    %162 = arith.mulf %160, %161 : vector<64x32xf32>
    %163 = tpu.concatenate %157, %152, %162, %62 in 0 : vector<64x32xf32>, vector<64x32xf32>, vector<64x32xf32>, vector<8x32xf32> -> vector<200x32xf32>
    %c288 = arith.constant 288 : index
    %c0_61 = arith.constant 0 : index
    %164 = vector.load %arg2[%c288, %c0_61] : memref<456x200xf32, #tpu.memory_space<vmem>>, vector<64x200xf32>
    %cst_62 = arith.constant dense<0.000000e+00> : vector<64x32xf32>
    %165 = tpu.matmul %164, %163, %cst_62 {dimension_numbers = #tpu.dot_dimension_numbers<[1], [0], [0], [1], [0, 0, 1, 1], [], []>} : vector<64x200xf32>, vector<200x32xf32>, vector<64x32xf32> -> vector<64x32xf32>
    %cst_63 = arith.constant 0.000000e+00 : f32
    %166 = vector.broadcast %cst_63 : f32 to vector<64x32xf32>
    %167 = arith.maximumf %165, %166 : vector<64x32xf32>
    %cst_64 = arith.constant 0.000000e+00 : f32
    %168 = vector.broadcast %cst_64 : f32 to vector<64x1xf32>
    %169 = vector.extract_strided_slice %167 {offsets = [0, 0], sizes = [64, 31], strides = [1, 1]} : vector<64x32xf32> to vector<64x31xf32>
    %170 = tpu.concatenate %168, %169 in 1 : vector<64x1xf32>, vector<64x31xf32> -> vector<64x32xf32>
    %171 = vector.broadcast %39 : vector<1x32xf32> to vector<64x32xf32>
    %172 = arith.mulf %170, %171 : vector<64x32xf32>
    %cst_65 = arith.constant 0.000000e+00 : f32
    %173 = vector.broadcast %cst_65 : f32 to vector<64x1xf32>
    %174 = vector.extract_strided_slice %167 {offsets = [0, 1], sizes = [64, 31], strides = [1, 1]} : vector<64x32xf32> to vector<64x31xf32>
    %175 = tpu.concatenate %174, %173 in 1 : vector<64x31xf32>, vector<64x1xf32> -> vector<64x32xf32>
    %176 = vector.broadcast %50 : vector<1x32xf32> to vector<64x32xf32>
    %177 = arith.mulf %175, %176 : vector<64x32xf32>
    %178 = tpu.concatenate %172, %167, %177, %62 in 0 : vector<64x32xf32>, vector<64x32xf32>, vector<64x32xf32>, vector<8x32xf32> -> vector<200x32xf32>
    %c352 = arith.constant 352 : index
    %c0_66 = arith.constant 0 : index
    %179 = vector.load %arg2[%c352, %c0_66] : memref<456x200xf32, #tpu.memory_space<vmem>>, vector<64x200xf32>
    %cst_67 = arith.constant dense<0.000000e+00> : vector<64x32xf32>
    %180 = tpu.matmul %179, %178, %cst_67 {dimension_numbers = #tpu.dot_dimension_numbers<[1], [0], [0], [1], [0, 0, 1, 1], [], []>} : vector<64x200xf32>, vector<200x32xf32>, vector<64x32xf32> -> vector<64x32xf32>
    %181 = arith.addf %180, %152 : vector<64x32xf32>
    %cst_68 = arith.constant 0.000000e+00 : f32
    %182 = vector.broadcast %cst_68 : f32 to vector<64x32xf32>
    %183 = arith.maximumf %181, %182 : vector<64x32xf32>
    %cst_69 = arith.constant 0.000000e+00 : f32
    %184 = vector.broadcast %cst_69 : f32 to vector<64x1xf32>
    %185 = vector.extract_strided_slice %183 {offsets = [0, 0], sizes = [64, 31], strides = [1, 1]} : vector<64x32xf32> to vector<64x31xf32>
    %186 = tpu.concatenate %184, %185 in 1 : vector<64x1xf32>, vector<64x31xf32> -> vector<64x32xf32>
    %187 = vector.broadcast %39 : vector<1x32xf32> to vector<64x32xf32>
    %188 = arith.mulf %186, %187 : vector<64x32xf32>
    %cst_70 = arith.constant 0.000000e+00 : f32
    %189 = vector.broadcast %cst_70 : f32 to vector<64x1xf32>
    %190 = vector.extract_strided_slice %183 {offsets = [0, 1], sizes = [64, 31], strides = [1, 1]} : vector<64x32xf32> to vector<64x31xf32>
    %191 = tpu.concatenate %190, %189 in 1 : vector<64x31xf32>, vector<64x1xf32> -> vector<64x32xf32>
    %192 = vector.broadcast %50 : vector<1x32xf32> to vector<64x32xf32>
    %193 = arith.mulf %191, %192 : vector<64x32xf32>
    %194 = tpu.concatenate %188, %183, %193, %62 in 0 : vector<64x32xf32>, vector<64x32xf32>, vector<64x32xf32>, vector<8x32xf32> -> vector<200x32xf32>
    %c416 = arith.constant 416 : index
    %c0_71 = arith.constant 0 : index
    %195 = vector.load %arg2[%c416, %c0_71] : memref<456x200xf32, #tpu.memory_space<vmem>>, vector<8x200xf32>
    %cst_72 = arith.constant dense<0.000000e+00> : vector<8x32xf32>
    %196 = tpu.matmul %195, %194, %cst_72 {dimension_numbers = #tpu.dot_dimension_numbers<[1], [0], [0], [1], [0, 0, 1, 1], [], []>} : vector<8x200xf32>, vector<200x32xf32>, vector<8x32xf32> -> vector<8x32xf32>
    %cst_73 = arith.constant 0.000000e+00 : f32
    %197 = vector.broadcast %cst_73 : f32 to vector<8x32xf32>
    %198 = arith.maximumf %196, %197 : vector<8x32xf32>
    %199 = vector.broadcast %0 : f32 to vector<8x32xf32>
    %200 = arith.mulf %198, %199 : vector<8x32xf32>
    %cst_74 = arith.constant 0.000000e+00 : f32
    %201 = vector.broadcast %cst_74 : f32 to vector<8x2xf32>
    %202 = vector.extract_strided_slice %200 {offsets = [0, 0], sizes = [8, 30], strides = [1, 1]} : vector<8x32xf32> to vector<8x30xf32>
    %203 = tpu.concatenate %201, %202 in 1 : vector<8x2xf32>, vector<8x30xf32> -> vector<8x32xf32>
    %204 = vector.broadcast %28 : vector<1x32xf32> to vector<8x32xf32>
    %205 = arith.mulf %203, %204 : vector<8x32xf32>
    %cst_75 = arith.constant 0.000000e+00 : f32
    %206 = vector.broadcast %cst_75 : f32 to vector<8x1xf32>
    %207 = vector.extract_strided_slice %200 {offsets = [0, 0], sizes = [8, 31], strides = [1, 1]} : vector<8x32xf32> to vector<8x31xf32>
    %208 = tpu.concatenate %206, %207 in 1 : vector<8x1xf32>, vector<8x31xf32> -> vector<8x32xf32>
    %209 = vector.broadcast %39 : vector<1x32xf32> to vector<8x32xf32>
    %210 = arith.mulf %208, %209 : vector<8x32xf32>
    %cst_76 = arith.constant 0.000000e+00 : f32
    %211 = vector.broadcast %cst_76 : f32 to vector<8x1xf32>
    %212 = vector.extract_strided_slice %200 {offsets = [0, 1], sizes = [8, 31], strides = [1, 1]} : vector<8x32xf32> to vector<8x31xf32>
    %213 = tpu.concatenate %212, %211 in 1 : vector<8x31xf32>, vector<8x1xf32> -> vector<8x32xf32>
    %214 = vector.broadcast %50 : vector<1x32xf32> to vector<8x32xf32>
    %215 = arith.mulf %213, %214 : vector<8x32xf32>
    %cst_77 = arith.constant 0.000000e+00 : f32
    %216 = vector.broadcast %cst_77 : f32 to vector<8x2xf32>
    %217 = vector.extract_strided_slice %200 {offsets = [0, 2], sizes = [8, 30], strides = [1, 1]} : vector<8x32xf32> to vector<8x30xf32>
    %218 = tpu.concatenate %217, %216 in 1 : vector<8x30xf32>, vector<8x2xf32> -> vector<8x32xf32>
    %219 = vector.broadcast %61 : vector<1x32xf32> to vector<8x32xf32>
    %220 = arith.mulf %218, %219 : vector<8x32xf32>
    %221 = tpu.concatenate %205, %210, %200, %215, %220, %62 in 0 : vector<8x32xf32>, vector<8x32xf32>, vector<8x32xf32>, vector<8x32xf32>, vector<8x32xf32>, vector<8x32xf32> -> vector<48x32xf32>
    %c424 = arith.constant 424 : index
    %c0_78 = arith.constant 0 : index
    %222 = vector.load %arg2[%c424, %c0_78] : memref<456x200xf32, #tpu.memory_space<vmem>>, vector<8x48xf32>
    %cst_79 = arith.constant dense<0.000000e+00> : vector<8x32xf32>
    %223 = tpu.matmul %222, %221, %cst_79 {dimension_numbers = #tpu.dot_dimension_numbers<[1], [0], [0], [1], [0, 0, 1, 1], [], []>} : vector<8x48xf32>, vector<48x32xf32>, vector<8x32xf32> -> vector<8x32xf32>
    %cst_80 = arith.constant 0.000000e+00 : f32
    %224 = vector.broadcast %cst_80 : f32 to vector<8x32xf32>
    %225 = arith.maximumf %223, %224 : vector<8x32xf32>
    %cst_81 = arith.constant 0.000000e+00 : f32
    %226 = vector.broadcast %cst_81 : f32 to vector<8x2xf32>
    %227 = vector.extract_strided_slice %225 {offsets = [0, 0], sizes = [8, 30], strides = [1, 1]} : vector<8x32xf32> to vector<8x30xf32>
    %228 = tpu.concatenate %226, %227 in 1 : vector<8x2xf32>, vector<8x30xf32> -> vector<8x32xf32>
    %229 = vector.broadcast %28 : vector<1x32xf32> to vector<8x32xf32>
    %230 = arith.mulf %228, %229 : vector<8x32xf32>
    %cst_82 = arith.constant 0.000000e+00 : f32
    %231 = vector.broadcast %cst_82 : f32 to vector<8x1xf32>
    %232 = vector.extract_strided_slice %225 {offsets = [0, 0], sizes = [8, 31], strides = [1, 1]} : vector<8x32xf32> to vector<8x31xf32>
    %233 = tpu.concatenate %231, %232 in 1 : vector<8x1xf32>, vector<8x31xf32> -> vector<8x32xf32>
    %234 = vector.broadcast %39 : vector<1x32xf32> to vector<8x32xf32>
    %235 = arith.mulf %233, %234 : vector<8x32xf32>
    %cst_83 = arith.constant 0.000000e+00 : f32
    %236 = vector.broadcast %cst_83 : f32 to vector<8x1xf32>
    %237 = vector.extract_strided_slice %225 {offsets = [0, 1], sizes = [8, 31], strides = [1, 1]} : vector<8x32xf32> to vector<8x31xf32>
    %238 = tpu.concatenate %237, %236 in 1 : vector<8x31xf32>, vector<8x1xf32> -> vector<8x32xf32>
    %239 = vector.broadcast %50 : vector<1x32xf32> to vector<8x32xf32>
    %240 = arith.mulf %238, %239 : vector<8x32xf32>
    %cst_84 = arith.constant 0.000000e+00 : f32
    %241 = vector.broadcast %cst_84 : f32 to vector<8x2xf32>
    %242 = vector.extract_strided_slice %225 {offsets = [0, 2], sizes = [8, 30], strides = [1, 1]} : vector<8x32xf32> to vector<8x30xf32>
    %243 = tpu.concatenate %242, %241 in 1 : vector<8x30xf32>, vector<8x2xf32> -> vector<8x32xf32>
    %244 = vector.broadcast %61 : vector<1x32xf32> to vector<8x32xf32>
    %245 = arith.mulf %243, %244 : vector<8x32xf32>
    %246 = tpu.concatenate %230, %235, %225, %240, %245, %62 in 0 : vector<8x32xf32>, vector<8x32xf32>, vector<8x32xf32>, vector<8x32xf32>, vector<8x32xf32>, vector<8x32xf32> -> vector<48x32xf32>
    %c432 = arith.constant 432 : index
    %c0_85 = arith.constant 0 : index
    %247 = vector.load %arg2[%c432, %c0_85] : memref<456x200xf32, #tpu.memory_space<vmem>>, vector<8x48xf32>
    %cst_86 = arith.constant dense<0.000000e+00> : vector<8x32xf32>
    %248 = tpu.matmul %247, %246, %cst_86 {dimension_numbers = #tpu.dot_dimension_numbers<[1], [0], [0], [1], [0, 0, 1, 1], [], []>} : vector<8x48xf32>, vector<48x32xf32>, vector<8x32xf32> -> vector<8x32xf32>
    %249 = arith.addf %248, %200 : vector<8x32xf32>
    %cst_87 = arith.constant 0.000000e+00 : f32
    %250 = vector.broadcast %cst_87 : f32 to vector<8x32xf32>
    %251 = arith.maximumf %249, %250 : vector<8x32xf32>
    %cst_88 = arith.constant 0.000000e+00 : f32
    %252 = vector.broadcast %cst_88 : f32 to vector<8x2xf32>
    %253 = vector.extract_strided_slice %251 {offsets = [0, 0], sizes = [8, 30], strides = [1, 1]} : vector<8x32xf32> to vector<8x30xf32>
    %254 = tpu.concatenate %252, %253 in 1 : vector<8x2xf32>, vector<8x30xf32> -> vector<8x32xf32>
    %255 = vector.broadcast %28 : vector<1x32xf32> to vector<8x32xf32>
    %256 = arith.mulf %254, %255 : vector<8x32xf32>
    %cst_89 = arith.constant 0.000000e+00 : f32
    %257 = vector.broadcast %cst_89 : f32 to vector<8x1xf32>
    %258 = vector.extract_strided_slice %251 {offsets = [0, 0], sizes = [8, 31], strides = [1, 1]} : vector<8x32xf32> to vector<8x31xf32>
    %259 = tpu.concatenate %257, %258 in 1 : vector<8x1xf32>, vector<8x31xf32> -> vector<8x32xf32>
    %260 = vector.broadcast %39 : vector<1x32xf32> to vector<8x32xf32>
    %261 = arith.mulf %259, %260 : vector<8x32xf32>
    %cst_90 = arith.constant 0.000000e+00 : f32
    %262 = vector.broadcast %cst_90 : f32 to vector<8x1xf32>
    %263 = vector.extract_strided_slice %251 {offsets = [0, 1], sizes = [8, 31], strides = [1, 1]} : vector<8x32xf32> to vector<8x31xf32>
    %264 = tpu.concatenate %263, %262 in 1 : vector<8x31xf32>, vector<8x1xf32> -> vector<8x32xf32>
    %265 = vector.broadcast %50 : vector<1x32xf32> to vector<8x32xf32>
    %266 = arith.mulf %264, %265 : vector<8x32xf32>
    %cst_91 = arith.constant 0.000000e+00 : f32
    %267 = vector.broadcast %cst_91 : f32 to vector<8x2xf32>
    %268 = vector.extract_strided_slice %251 {offsets = [0, 2], sizes = [8, 30], strides = [1, 1]} : vector<8x32xf32> to vector<8x30xf32>
    %269 = tpu.concatenate %268, %267 in 1 : vector<8x30xf32>, vector<8x2xf32> -> vector<8x32xf32>
    %270 = vector.broadcast %61 : vector<1x32xf32> to vector<8x32xf32>
    %271 = arith.mulf %269, %270 : vector<8x32xf32>
    %272 = tpu.concatenate %256, %261, %251, %266, %271, %62 in 0 : vector<8x32xf32>, vector<8x32xf32>, vector<8x32xf32>, vector<8x32xf32>, vector<8x32xf32>, vector<8x32xf32> -> vector<48x32xf32>
    %c440 = arith.constant 440 : index
    %c0_92 = arith.constant 0 : index
    %273 = vector.load %arg2[%c440, %c0_92] : memref<456x200xf32, #tpu.memory_space<vmem>>, vector<8x48xf32>
    %cst_93 = arith.constant dense<0.000000e+00> : vector<8x32xf32>
    %274 = tpu.matmul %273, %272, %cst_93 {dimension_numbers = #tpu.dot_dimension_numbers<[1], [0], [0], [1], [0, 0, 1, 1], [], []>} : vector<8x48xf32>, vector<48x32xf32>, vector<8x32xf32> -> vector<8x32xf32>
    %cst_94 = arith.constant 0.000000e+00 : f32
    %275 = vector.broadcast %cst_94 : f32 to vector<8x32xf32>
    %276 = arith.maximumf %274, %275 : vector<8x32xf32>
    %cst_95 = arith.constant 0.000000e+00 : f32
    %277 = vector.broadcast %cst_95 : f32 to vector<8x2xf32>
    %278 = vector.extract_strided_slice %276 {offsets = [0, 0], sizes = [8, 30], strides = [1, 1]} : vector<8x32xf32> to vector<8x30xf32>
    %279 = tpu.concatenate %277, %278 in 1 : vector<8x2xf32>, vector<8x30xf32> -> vector<8x32xf32>
    %280 = vector.broadcast %28 : vector<1x32xf32> to vector<8x32xf32>
    %281 = arith.mulf %279, %280 : vector<8x32xf32>
    %cst_96 = arith.constant 0.000000e+00 : f32
    %282 = vector.broadcast %cst_96 : f32 to vector<8x1xf32>
    %283 = vector.extract_strided_slice %276 {offsets = [0, 0], sizes = [8, 31], strides = [1, 1]} : vector<8x32xf32> to vector<8x31xf32>
    %284 = tpu.concatenate %282, %283 in 1 : vector<8x1xf32>, vector<8x31xf32> -> vector<8x32xf32>
    %285 = vector.broadcast %39 : vector<1x32xf32> to vector<8x32xf32>
    %286 = arith.mulf %284, %285 : vector<8x32xf32>
    %cst_97 = arith.constant 0.000000e+00 : f32
    %287 = vector.broadcast %cst_97 : f32 to vector<8x1xf32>
    %288 = vector.extract_strided_slice %276 {offsets = [0, 1], sizes = [8, 31], strides = [1, 1]} : vector<8x32xf32> to vector<8x31xf32>
    %289 = tpu.concatenate %288, %287 in 1 : vector<8x31xf32>, vector<8x1xf32> -> vector<8x32xf32>
    %290 = vector.broadcast %50 : vector<1x32xf32> to vector<8x32xf32>
    %291 = arith.mulf %289, %290 : vector<8x32xf32>
    %cst_98 = arith.constant 0.000000e+00 : f32
    %292 = vector.broadcast %cst_98 : f32 to vector<8x2xf32>
    %293 = vector.extract_strided_slice %276 {offsets = [0, 2], sizes = [8, 30], strides = [1, 1]} : vector<8x32xf32> to vector<8x30xf32>
    %294 = tpu.concatenate %293, %292 in 1 : vector<8x30xf32>, vector<8x2xf32> -> vector<8x32xf32>
    %295 = vector.broadcast %61 : vector<1x32xf32> to vector<8x32xf32>
    %296 = arith.mulf %294, %295 : vector<8x32xf32>
    %297 = tpu.concatenate %281, %286, %276, %291, %296, %62 in 0 : vector<8x32xf32>, vector<8x32xf32>, vector<8x32xf32>, vector<8x32xf32>, vector<8x32xf32>, vector<8x32xf32> -> vector<48x32xf32>
    %c448 = arith.constant 448 : index
    %c0_99 = arith.constant 0 : index
    %298 = vector.load %arg2[%c448, %c0_99] : memref<456x200xf32, #tpu.memory_space<vmem>>, vector<8x48xf32>
    %cst_100 = arith.constant dense<0.000000e+00> : vector<8x32xf32>
    %299 = tpu.matmul %298, %297, %cst_100 {dimension_numbers = #tpu.dot_dimension_numbers<[1], [0], [0], [1], [0, 0, 1, 1], [], []>} : vector<8x48xf32>, vector<48x32xf32>, vector<8x32xf32> -> vector<8x32xf32>
    %300 = arith.addf %299, %251 : vector<8x32xf32>
    %cst_101 = arith.constant 0.000000e+00 : f32
    %301 = vector.broadcast %cst_101 : f32 to vector<8x32xf32>
    %302 = arith.maximumf %300, %301 : vector<8x32xf32>
    %303 = vector.broadcast %0 : f32 to vector<8x32xf32>
    %304 = arith.mulf %302, %303 : vector<8x32xf32>
    %305 = vector.extract_strided_slice %304 {offsets = [0, 0], sizes = [8, 16], strides = [1, 1]} : vector<8x32xf32> to vector<8x16xf32>
    %c0_102 = arith.constant 0 : index
    %c0_103 = arith.constant 0 : index
    %c0_104 = arith.constant 0 : index
    %306 = vector.load %arg3[%c0_102, %c0_103, %c0_104] : memref<2x8x16xf32, #tpu.memory_space<vmem>>, vector<1x8x16xf32>
    %307 = vector.shape_cast %306 : vector<1x8x16xf32> to vector<8x16xf32>
    %308 = vector.shape_cast %305 : vector<8x16xf32> to vector<1x8x16xf32>
    tpu.vector_store %arg3[%c0_102, %c0_103, %c0_104], %308 {strides = array<i32>} : memref<2x8x16xf32, #tpu.memory_space<vmem>>, vector<1x8x16xf32>,
    %309 = vector.extract_strided_slice %304 {offsets = [0, 16], sizes = [8, 16], strides = [1, 1]} : vector<8x32xf32> to vector<8x16xf32>
    %c1_105 = arith.constant 1 : index
    %c0_106 = arith.constant 0 : index
    %c0_107 = arith.constant 0 : index
    %310 = vector.load %arg3[%c1_105, %c0_106, %c0_107] : memref<2x8x16xf32, #tpu.memory_space<vmem>>, vector<1x8x16xf32>
    %311 = vector.shape_cast %310 : vector<1x8x16xf32> to vector<8x16xf32>
    %312 = vector.shape_cast %309 : vector<8x16xf32> to vector<1x8x16xf32>
    tpu.vector_store %arg3[%c1_105, %c0_106, %c0_107], %312 {strides = array<i32>} : memref<2x8x16xf32, #tpu.memory_space<vmem>>, vector<1x8x16xf32>,
    return
  }
}

</mosaic_0001>

<llo_original>
// kernel: tpu_custom_call.1
$region0: #{tpu_custom_call.1}
  #allocation0 [shape = 'u32[]', space=smem, size = 0x4, offset = 0x4, fixed_abs, tag = 'smem constant byte address 0x4 - core index']
  #allocation1 [shape = 'u32[72,128]{1,0:T(1,128)}', space=vmem, size = 0x9000, scoped, tag = 'internal scratch']
  #allocation2 [shape = 'f32[1]{0:T(128)S(6)}', space=smem, size = 0x200, scoped, tag = 'scoped memory for tpu_custom_call.1']
  %s0 = inlined_call_operand.vmem [shape: f32[2,2,8,16], index: 0, kind: input, shape index: {}]
  %s1 = inlined_call_operand.<no memory space> [shape: f32[1], index: 1, kind: input, shape index: {}]
  %s2 = inlined_call_operand.vmem [shape: f32[456,200], index: 2, kind: input, shape index: {}]
  %s3 = inlined_call_operand.hbm [shape: f32[2,8,16], index: 3, kind: output, shape index: {}]
  %s4 = sld [smem:[#allocation0]]
  $region22: #{tpu_custom_call.1} parent=0
    _
  %s6 = ssub.s32 1, %s4
  %s7 = scalar_select 0, %s6, %s4
  %8 = sst [smem:[#allocation2]] %s1
  $region1: #{tpu_custom_call.1} parent=0
    #allocation3 [shape = 'u8[8192]{0}', space=vmem, size = 0x2000, scoped, tag = 'output window, operand 0, single buffered']
    #allocation4 [shape = 's32[1]{0}', space=sflag, size = 0x4, scoped, tag = 'scoped memory for tpu_custom_call.1']
    %9 = vsyncpa [#allocation4], 0
    // Predicated region
    $region2: #{tpu_custom_call.1} parent=1 // pred_check
      _
    $region3: #{tpu_custom_call.1} parent=1 // pred_check_branch
      %11 = sbr.rel (0) target = $region5
    $region4: #{tpu_custom_call.1} parent=1 // pred_region
      _
    $region5: #{tpu_custom_call.1} parent=1 // pred_fallthru
      _
    // Predicated region
    $region6: #{tpu_custom_call.1} parent=1 // pred_check
      _
    $region7: #{tpu_custom_call.1} parent=1 // pred_check_branch
      %13 = sbr.rel (0) target = $region9
    $region8: #{tpu_custom_call.1} parent=1 // pred_region
      _
    $region9: #{tpu_custom_call.1} parent=1 // pred_fallthru
      _
    // Predicated region
    $region10: #{tpu_custom_call.1} parent=1 // pred_check
      _
    $region11: #{tpu_custom_call.1} parent=1 // pred_check_branch
      %15 = sbr.rel (0) target = $region13
    $region12: #{tpu_custom_call.1} parent=1 // pred_region
      _
    $region13: #{tpu_custom_call.1} parent=1 // pred_fallthru
      _
    %s16 = sld [smem:[#allocation2]]
    %v17 = vlaneseq
    %v18 = vand.u32 %v17, 127
    %vm19 = vcmp.lt.s32.totalorder %v18, 0
    %v20 = vsub.s32 0, %v18
    %v21 = vsel %vm19, %v20, %v18
    %v22 = vshrl.u32 %v21, 4
    %v23 = vand.u32 %v21, 15
    %v24 = vsub.s32 0, %v23
    %v25 = vsel %vm19, %v24, %v23
    %vm26 = vcmp.ne.s32.totalorder %v25, 0
    %vm27 = vcmp.lt.s32.totalorder %v25, 0
    %vm28 = vmand %vm27, %vm26
    %v29 = vadd.s32 %v25, 16
    %v30 = vsel %vm28, %v29, %v25
    %v31 = vadd.s32 %v30, 4294967294
    %vm32 = vcmp.ge.s32.totalorder %v31, 0
    %vm33 = vcmp.lt.s32.totalorder %v31, 16
    %vm34 = vmand %vm32, %vm33
    %v35 = vsel %vm34, 1, 0
    %v36 = vcvt.s32.f32 %v35
    %v37 = vadd.s32 %v30, 4294967295
    %vm38 = vcmp.ge.s32.totalorder %v37, 0
    %vm39 = vcmp.lt.s32.totalorder %v37, 16
    %vm40 = vmand %vm38, %vm39
    %v41 = vsel %vm40, 1, 0
    %v42 = vcvt.s32.f32 %v41
    %v43 = vadd.s32 %v30, 1
    %vm44 = vcmp.ge.s32.totalorder %v43, 0
    %vm45 = vcmp.lt.s32.totalorder %v43, 16
    %vm46 = vmand %vm44, %vm45
    %v47 = vsel %vm46, 1, 0
    %v48 = vcvt.s32.f32 %v47
    %v49 = vadd.s32 %v30, 2
    %vm50 = vcmp.ge.s32.totalorder %v49, 0
    %vm51 = vcmp.lt.s32.totalorder %v49, 16
    %vm52 = vmand %vm50, %vm51
    %v53 = vsel %vm52, 1, 0
    %v54 = vcvt.s32.f32 %v53
    %v55 = vld [vmem:[%s0] sm:$0xff]
    %s56 = scalar_lea.vmem %s0, 16
    %v57 = vld [vmem:[%s56] sm:$0xff]
    %59 = vrot.lane.b32.xlu0 %v57, 16
    %v60 = vpop.permute.xlu0 %59
    %vm62 = vcmask 130048
    %v63 = vsel %vm62, %v55, %v60
    %s64 = scalar_lea.vmem %s0, 8
    %v65 = vld [vmem:[%s64] sm:$0xff]
    %s66 = scalar_lea.vmem %s0, 24
    %v67 = vld [vmem:[%s66] sm:$0xff]
    %69 = vrot.lane.b32.xlu0 %v67, 16
    %v70 = vpop.permute.xlu0 %69
    %v72 = vsel %vm62, %v65, %v70
    %75 = vrot.lane.b32.xlu0 %v63, 1
    %v76 = vpop.permute.xlu0 %75
    %77 = vrot.lane.b32.xlu0 %v72, 1
    %v78 = vpop.permute.xlu0 %77
    %vm81 = vcmask 7168
    %v82 = vsel %vm81, 0.0, %v76
    %v83 = vsel %vm81, 0.0, %v78
    %v84 = vmul.f32 %v82, %v42
    %v85 = vmul.f32 %v83, %v42
    %86 = vrot.lane.b32.xlu0 %v63, 127
    %v87 = vpop.permute.xlu0 %86
    %88 = vrot.lane.b32.xlu0 %v72, 127
    %v89 = vpop.permute.xlu0 %88
    %vm92 = vcmask 252928
    %v93 = vsel %vm92, %v87, 0.0
    %v94 = vsel %vm92, %v89, 0.0
    %v95 = vmul.f32 %v93, %v48
    %v96 = vmul.f32 %v94, %v48
    %v97 = vld [vmem:[%s2] sm:$0xff]
    %v98 = vld [vmem:[%s2 + $0x10] sm:$0xff]
    %v99 = vld [vmem:[%s2 + $0x20] sm:$0xff]
    %v100 = vld [vmem:[%s2 + $0x30] sm:$0xff]
    %vm101 = vcmask 457728
    %v103 = vsel %vm101, %v97, 0
    %v106 = vsel %vm101, %v98, 0
    %v109 = vsel %vm101, %v99, 0
    %v112 = vsel %vm101, %v100, 0
    %114 = vmatpush.msra.mxu0 0.0
    %115 = vmatpush.msra.mxu0 0.0
    %116 = vmatpush.msra.mxu0 0.0
    %117 = vmatpush.msra.mxu0 0.0
    %118 = vmatpush.msra.mxu0 0.0
    %119 = vmatpush.msra.mxu0 0.0
    %120 = vmatpush.msra.mxu0 0.0
    %121 = vmatpush.msra.mxu0 0.0
    %122 = vmatpush.msra.mxu0 0.0
    %123 = vmatpush.msra.mxu0 1.0
    %124 = vmatpush.msra.mxu0 %v96
    %125 = vmatpush.msra.mxu0 %v95
    %126 = vmatpush.msra.mxu0 %v72
    %127 = vmatpush.msra.mxu0 %v63
    %128 = vmatpush.msra.mxu0 %v85
    %129 = vmatpush.msra.mxu0 %v84
    %130 = vmatmul.f32.gmra.mxu0 %v103
    %v131 = vpop.f32.mrf.mxu0
    %v132 = vadd.f32 0.0, %v131
    %133 = vmatmul.f32.gmra.mxu0 %v106
    %v134 = vpop.f32.mrf.mxu0
    %v135 = vadd.f32 0.0, %v134
    %136 = vmatmul.f32.gmra.mxu0 %v109
    %v137 = vpop.f32.mrf.mxu0
    %v138 = vadd.f32 0.0, %v137
    %139 = vmatmul.f32.gmra.mxu0 %v112
    %v140 = vpop.f32.mrf.mxu0
    %v141 = vadd.f32 0.0, %v140
    %142 = vdwg.mxu0
    %v143 = vmax.f32 %v132, 0.0
    %v144 = vmax.f32 %v135, 0.0
    %v145 = vmax.f32 %v138, 0.0
    %v146 = vmax.f32 %v141, 0.0
    %151 = vrot.lane.b32.xlu0 %v143, 1
    %v152 = vpop.permute.xlu0 %151
    %153 = vrot.lane.b32.xlu0 %v144, 1
    %v154 = vpop.permute.xlu0 %153
    %155 = vrot.lane.b32.xlu0 %v145, 1
    %v156 = vpop.permute.xlu0 %155
    %157 = vrot.lane.b32.xlu0 %v146, 1
    %v158 = vpop.permute.xlu0 %157
    %v163 = vsel %vm81, 0.0, %v152
    %v164 = vsel %vm81, 0.0, %v154
    %v165 = vsel %vm81, 0.0, %v156
    %v166 = vsel %vm81, 0.0, %v158
    %v167 = vmul.f32 %v163, %v42
    %v168 = vmul.f32 %v164, %v42
    %v169 = vmul.f32 %v165, %v42
    %v170 = vmul.f32 %v166, %v42
    %171 = vrot.lane.b32.xlu0 %v143, 127
    %v172 = vpop.permute.xlu0 %171
    %173 = vrot.lane.b32.xlu0 %v144, 127
    %v174 = vpop.permute.xlu0 %173
    %175 = vrot.lane.b32.xlu0 %v145, 127
    %v176 = vpop.permute.xlu0 %175
    %177 = vrot.lane.b32.xlu0 %v146, 127
    %v178 = vpop.permute.xlu0 %177
    %v183 = vsel %vm92, %v172, 0.0
    %v184 = vsel %vm92, %v174, 0.0
    %v185 = vsel %vm92, %v176, 0.0
    %v186 = vsel %vm92, %v178, 0.0
    %v187 = vmul.f32 %v183, %v48
    %v188 = vmul.f32 %v184, %v48
    %v189 = vmul.f32 %v185, %v48
    %v190 = vmul.f32 %v186, %v48
    %v191 = vld [vmem:[%s2 + $0x40] sm:$0xff]
    %v192 = vld [vmem:[%s2 + $0x50] sm:$0xff]
    %v193 = vld [vmem:[%s2 + $0x60] sm:$0xff]
    %v194 = vld [vmem:[%s2 + $0x70] sm:$0xff]
    %vm195 = vcmask 850944
    %v197 = vsel %vm195, %v191, 0
    %v200 = vsel %vm195, %v192, 0
    %v203 = vsel %vm195, %v193, 0
    %v206 = vsel %vm195, %v194, 0
    %208 = vmatpush.msra.mxu0 0.0
    %209 = vmatpush.msra.mxu0 0.0
    %210 = vmatpush.msra.mxu0 0.0
    %211 = vmatpush.msra.mxu0 1.0
    %212 = vmatpush.msra.mxu0 %v190
    %213 = vmatpush.msra.mxu0 %v189
    %214 = vmatpush.msra.mxu0 %v188
    %215 = vmatpush.msra.mxu0 %v187
    %216 = vmatpush.msra.mxu0 %v146
    %217 = vmatpush.msra.mxu0 %v145
    %218 = vmatpush.msra.mxu0 %v144
    %219 = vmatpush.msra.mxu0 %v143
    %220 = vmatpush.msra.mxu0 %v170
    %221 = vmatpush.msra.mxu0 %v169
    %222 = vmatpush.msra.mxu0 %v168
    %223 = vmatpush.msra.mxu0 %v167
    %224 = vmatmul.f32.gmra.mxu0 %v197
    %v225 = vpop.f32.mrf.mxu0
    %v226 = vadd.f32 0.0, %v225
    %227 = vmatmul.f32.gmra.mxu0 %v200
    %v228 = vpop.f32.mrf.mxu0
    %v229 = vadd.f32 0.0, %v228
    %230 = vmatmul.f32.gmra.mxu0 %v203
    %v231 = vpop.f32.mrf.mxu0
    %v232 = vadd.f32 0.0, %v231
    %233 = vmatmul.f32.gmra.mxu0 %v206
    %v234 = vpop.f32.mrf.mxu0
    %v235 = vadd.f32 0.0, %v234
    %236 = vdwg.mxu0
    %v237 = vmax.f32 %v226, 0.0
    %v238 = vmax.f32 %v229, 0.0
    %v239 = vmax.f32 %v232, 0.0
    %v240 = vmax.f32 %v235, 0.0
    %245 = vrot.lane.b32.xlu0 %v237, 1
    %v246 = vpop.permute.xlu0 %245
    %247 = vrot.lane.b32.xlu0 %v238, 1
    %v248 = vpop.permute.xlu0 %247
    %249 = vrot.lane.b32.xlu0 %v239, 1
    %v250 = vpop.permute.xlu0 %249
    %251 = vrot.lane.b32.xlu0 %v240, 1
    %v252 = vpop.permute.xlu0 %251
    %v257 = vsel %vm81, 0.0, %v246
    %v258 = vsel %vm81, 0.0, %v248
    %v259 = vsel %vm81, 0.0, %v250
    %v260 = vsel %vm81, 0.0, %v252
    %v261 = vmul.f32 %v257, %v42
    %v262 = vmul.f32 %v258, %v42
    %v263 = vmul.f32 %v259, %v42
    %v264 = vmul.f32 %v260, %v42
    %265 = vrot.lane.b32.xlu0 %v237, 127
    %v266 = vpop.permute.xlu0 %265
    %267 = vrot.lane.b32.xlu0 %v238, 127
    %v268 = vpop.permute.xlu0 %267
    %269 = vrot.lane.b32.xlu0 %v239, 127
    %v270 = vpop.permute.xlu0 %269
    %271 = vrot.lane.b32.xlu0 %v240, 127
    %v272 = vpop.permute.xlu0 %271
    %v277 = vsel %vm92, %v266, 0.0
    %v278 = vsel %vm92, %v268, 0.0
    %v279 = vsel %vm92, %v270, 0.0
    %v280 = vsel %vm92, %v272, 0.0
    %v281 = vmul.f32 %v277, %v48
    %v282 = vmul.f32 %v278, %v48
    %v283 = vmul.f32 %v279, %v48
    %v284 = vmul.f32 %v280, %v48
    %v285 = vld [vmem:[%s2 + $0x80] sm:$0xff]
    %v286 = vld [vmem:[%s2 + $0x90] sm:$0xff]
    %v287 = vld [vmem:[%s2 + $0xa0] sm:$0xff]
    %v288 = vld [vmem:[%s2 + $0xb0] sm:$0xff]
    %v290 = vsel %vm195, %v285, 0
    %v293 = vsel %vm195, %v286, 0
    %v296 = vsel %vm195, %v287, 0
    %v299 = vsel %vm195, %v288, 0
    %301 = vmatpush.msra.mxu0 0.0
    %302 = vmatpush.msra.mxu0 0.0
    %303 = vmatpush.msra.mxu0 0.0
    %304 = vmatpush.msra.mxu0 1.0
    %305 = vmatpush.msra.mxu0 %v284
    %306 = vmatpush.msra.mxu0 %v283
    %307 = vmatpush.msra.mxu0 %v282
    %308 = vmatpush.msra.mxu0 %v281
    %309 = vmatpush.msra.mxu0 %v240
    %310 = vmatpush.msra.mxu0 %v239
    %311 = vmatpush.msra.mxu0 %v238
    %312 = vmatpush.msra.mxu0 %v237
    %313 = vmatpush.msra.mxu0 %v264
    %314 = vmatpush.msra.mxu0 %v263
    %315 = vmatpush.msra.mxu0 %v262
    %316 = vmatpush.msra.mxu0 %v261
    %317 = vmatmul.f32.gmra.mxu0 %v290
    %v318 = vpop.f32.mrf.mxu0
    %v319 = vadd.f32 %v143, %v318
    %320 = vmatmul.f32.gmra.mxu0 %v293
    %v321 = vpop.f32.mrf.mxu0
    %v322 = vadd.f32 %v144, %v321
    %323 = vmatmul.f32.gmra.mxu0 %v296
    %v324 = vpop.f32.mrf.mxu0
    %v325 = vadd.f32 %v145, %v324
    %326 = vmatmul.f32.gmra.mxu0 %v299
    %v327 = vpop.f32.mrf.mxu0
    %v328 = vadd.f32 %v146, %v327
    %329 = vdwg.mxu0
    %v330 = vmax.f32 %v319, 0.0
    %v331 = vmax.f32 %v322, 0.0
    %v332 = vmax.f32 %v325, 0.0
    %v333 = vmax.f32 %v328, 0.0
    %v334 = vld [vmem:[%s2 + $0x1c0] sm:$0xff]
    %v335 = vld [vmem:[%s2 + $0x1d0] sm:$0xff]
    %v336 = vld [vmem:[%s2 + $0x1e0] sm:$0xff]
    %v337 = vld [vmem:[%s2 + $0x1f0] sm:$0xff]
    %v338 = vld [vmem:[%s2 + $0x200] sm:$0xff]
    %v339 = vld [vmem:[%s2 + $0x210] sm:$0xff]
    %v340 = vld [vmem:[%s2 + $0x220] sm:$0xff]
    %v341 = vld [vmem:[%s2 + $0x230] sm:$0xff]
    %vm342 = vcmask 261120
    %v344 = vsel %vm342, %v334, 0
    %v347 = vsel %vm342, %v335, 0
    %v350 = vsel %vm342, %v336, 0
    %v353 = vsel %vm342, %v337, 0
    %v356 = vsel %vm342, %v338, 0
    %v359 = vsel %vm342, %v339, 0
    %v362 = vsel %vm342, %v340, 0
    %v365 = vsel %vm342, %v341, 0
    %367 = vmatpush.msra.mxu0 0.0
    %368 = vmatpush.msra.mxu0 0.0
    %369 = vmatpush.msra.mxu0 0.0
    %370 = vmatpush.msra.mxu0 0.0
    %371 = vmatpush.msra.mxu0 0.0
    %372 = vmatpush.msra.mxu0 0.0
    %373 = vmatpush.msra.mxu0 0.0
    %374 = vmatpush.msra.mxu0 0.0
    %375 = vmatpush.msra.mxu0 0.0
    %376 = vmatpush.msra.mxu0 0.0
    %377 = vmatpush.msra.mxu0 0.0
    %378 = vmatpush.msra.mxu0 0.0
    %379 = vmatpush.msra.mxu0 %v333
    %380 = vmatpush.msra.mxu0 %v332
    %381 = vmatpush.msra.mxu0 %v331
    %382 = vmatpush.msra.mxu0 %v330
    %383 = vmatmul.f32.gmra.mxu0 %v344
    %v384 = vpop.f32.mrf.mxu0
    %v385 = vadd.f32 0.0, %v384
    %386 = vmatmul.f32.gmra.mxu0 %v347
    %v387 = vpop.f32.mrf.mxu0
    %v388 = vadd.f32 0.0, %v387
    %389 = vmatmul.f32.gmra.mxu0 %v350
    %v390 = vpop.f32.mrf.mxu0
    %v391 = vadd.f32 0.0, %v390
    %392 = vmatmul.f32.gmra.mxu0 %v353
    %v393 = vpop.f32.mrf.mxu0
    %v394 = vadd.f32 0.0, %v393
    %395 = vmatmul.f32.gmra.mxu0 %v356
    %v396 = vpop.f32.mrf.mxu0
    %v397 = vadd.f32 0.0, %v396
    %398 = vmatmul.f32.gmra.mxu0 %v359
    %v399 = vpop.f32.mrf.mxu0
    %v400 = vadd.f32 0.0, %v399
    %401 = vmatmul.f32.gmra.mxu0 %v362
    %v402 = vpop.f32.mrf.mxu0
    %v403 = vadd.f32 0.0, %v402
    %404 = vmatmul.f32.gmra.mxu0 %v365
    %v405 = vpop.f32.mrf.mxu0
    %v406 = vadd.f32 0.0, %v405
    %407 = vdwg.mxu0
    %412 = vrot.lane.b32.xlu0 %v330, 1
    %v413 = vpop.permute.xlu0 %412
    %414 = vrot.lane.b32.xlu0 %v331, 1
    %v415 = vpop.permute.xlu0 %414
    %416 = vrot.lane.b32.xlu0 %v332, 1
    %v417 = vpop.permute.xlu0 %416
    %418 = vrot.lane.b32.xlu0 %v333, 1
    %v419 = vpop.permute.xlu0 %418
    %v424 = vsel %vm81, 0.0, %v413
    %v425 = vsel %vm81, 0.0, %v415
    %v426 = vsel %vm81, 0.0, %v417
    %v427 = vsel %vm81, 0.0, %v419
    %v428 = vmul.f32 %v424, %v42
    %v429 = vmul.f32 %v425, %v42
    %v430 = vmul.f32 %v426, %v42
    %v431 = vmul.f32 %v427, %v42
    %432 = vrot.lane.b32.xlu0 %v330, 127
    %v433 = vpop.permute.xlu0 %432
    %434 = vrot.lane.b32.xlu0 %v331, 127
    %v435 = vpop.permute.xlu0 %434
    %436 = vrot.lane.b32.xlu0 %v332, 127
    %v437 = vpop.permute.xlu0 %436
    %438 = vrot.lane.b32.xlu0 %v333, 127
    %v439 = vpop.permute.xlu0 %438
    %v444 = vsel %vm92, %v433, 0.0
    %v445 = vsel %vm92, %v435, 0.0
    %v446 = vsel %vm92, %v437, 0.0
    %v447 = vsel %vm92, %v439, 0.0
    %v448 = vmul.f32 %v444, %v48
    %v449 = vmul.f32 %v445, %v48
    %v450 = vmul.f32 %v446, %v48
    %v451 = vmul.f32 %v447, %v48
    %v452 = vld [vmem:[%s2 + $0xc0] sm:$0xff]
    %v453 = vld [vmem:[%s2 + $0xd0] sm:$0xff]
    %v454 = vld [vmem:[%s2 + $0xe0] sm:$0xff]
    %v455 = vld [vmem:[%s2 + $0xf0] sm:$0xff]
    %v456 = vld [vmem:[%s2 + $0x100] sm:$0xff]
    %v457 = vld [vmem:[%s2 + $0x110] sm:$0xff]
    %v458 = vld [vmem:[%s2 + $0x120] sm:$0xff]
    %v459 = vld [vmem:[%s2 + $0x130] sm:$0xff]
    %v461 = vsel %vm195, %v452, 0
    %v464 = vsel %vm195, %v453, 0
    %v467 = vsel %vm195, %v454, 0
    %v470 = vsel %vm195, %v455, 0
    %v473 = vsel %vm195, %v456, 0
    %v476 = vsel %vm195, %v457, 0
    %v479 = vsel %vm195, %v458, 0
    %v482 = vsel %vm195, %v459, 0
    %484 = vmatpush.msra.mxu0 0.0
    %485 = vmatpush.msra.mxu0 0.0
    %486 = vmatpush.msra.mxu0 0.0
    %487 = vmatpush.msra.mxu0 1.0
    %488 = vmatpush.msra.mxu0 %v451
    %489 = vmatpush.msra.mxu0 %v450
    %490 = vmatpush.msra.mxu0 %v449
    %491 = vmatpush.msra.mxu0 %v448
    %492 = vmatpush.msra.mxu0 %v333
    %493 = vmatpush.msra.mxu0 %v332
    %494 = vmatpush.msra.mxu0 %v331
    %495 = vmatpush.msra.mxu0 %v330
    %496 = vmatpush.msra.mxu0 %v431
    %497 = vmatpush.msra.mxu0 %v430
    %498 = vmatpush.msra.mxu0 %v429
    %499 = vmatpush.msra.mxu0 %v428
    %500 = vmatmul.f32.gmra.mxu0 %v461
    %v501 = vpop.f32.mrf.mxu0
    %v502 = vadd.f32 0.0, %v501
    %503 = vmatmul.f32.gmra.mxu0 %v464
    %v504 = vpop.f32.mrf.mxu0
    %v505 = vadd.f32 0.0, %v504
    %506 = vmatmul.f32.gmra.mxu0 %v467
    %v507 = vpop.f32.mrf.mxu0
    %v508 = vadd.f32 0.0, %v507
    %509 = vmatmul.f32.gmra.mxu0 %v470
    %v510 = vpop.f32.mrf.mxu0
    %v511 = vadd.f32 0.0, %v510
    %512 = vmatmul.f32.gmra.mxu0 %v473
    %v513 = vpop.f32.mrf.mxu0
    %v514 = vadd.f32 0.0, %v513
    %515 = vmatmul.f32.gmra.mxu0 %v476
    %v516 = vpop.f32.mrf.mxu0
    %v517 = vadd.f32 0.0, %v516
    %518 = vmatmul.f32.gmra.mxu0 %v479
    %v519 = vpop.f32.mrf.mxu0
    %v520 = vadd.f32 0.0, %v519
    %521 = vmatmul.f32.gmra.mxu0 %v482
    %v522 = vpop.f32.mrf.mxu0
    %v523 = vadd.f32 0.0, %v522
    %524 = vdwg.mxu0
    %v525 = vmax.f32 %v502, 0.0
    %v526 = vmax.f32 %v505, 0.0
    %v527 = vmax.f32 %v508, 0.0
    %v528 = vmax.f32 %v511, 0.0
    %v529 = vmax.f32 %v514, 0.0
    %v530 = vmax.f32 %v517, 0.0
    %v531 = vmax.f32 %v520, 0.0
    %v532 = vmax.f32 %v523, 0.0
    %541 = vrot.lane.b32.xlu0 %v525, 1
    %v542 = vpop.permute.xlu0 %541
    %543 = vrot.lane.b32.xlu0 %v526, 1
    %v544 = vpop.permute.xlu0 %543
    %545 = vrot.lane.b32.xlu0 %v527, 1
    %v546 = vpop.permute.xlu0 %545
    %547 = vrot.lane.b32.xlu0 %v528, 1
    %v548 = vpop.permute.xlu0 %547
    %549 = vrot.lane.b32.xlu0 %v529, 1
    %v550 = vpop.permute.xlu0 %549
    %551 = vrot.lane.b32.xlu0 %v530, 1
    %v552 = vpop.permute.xlu0 %551
    %553 = vrot.lane.b32.xlu0 %v531, 1
    %v554 = vpop.permute.xlu0 %553
    %555 = vrot.lane.b32.xlu0 %v532, 1
    %v556 = vpop.permute.xlu0 %555
    %v565 = vsel %vm81, 0.0, %v542
    %v566 = vsel %vm81, 0.0, %v544
    %v567 = vsel %vm81, 0.0, %v546
    %v568 = vsel %vm81, 0.0, %v548
    %v569 = vsel %vm81, 0.0, %v550
    %v570 = vsel %vm81, 0.0, %v552
    %v571 = vsel %vm81, 0.0, %v554
    %v572 = vsel %vm81, 0.0, %v556
    %v573 = vmul.f32 %v565, %v42
    %v574 = vmul.f32 %v566, %v42
    %v575 = vmul.f32 %v567, %v42
    %v576 = vmul.f32 %v568, %v42
    %v577 = vmul.f32 %v569, %v42
    %v578 = vmul.f32 %v570, %v42
    %v579 = vmul.f32 %v571, %v42
    %v580 = vmul.f32 %v572, %v42
    %581 = vrot.lane.b32.xlu0 %v525, 127
    %v582 = vpop.permute.xlu0 %581
    %583 = vrot.lane.b32.xlu0 %v526, 127
    %v584 = vpop.permute.xlu0 %583
    %585 = vrot.lane.b32.xlu0 %v527, 127
    %v586 = vpop.permute.xlu0 %585
    %587 = vrot.lane.b32.xlu0 %v528, 127
    %v588 = vpop.permute.xlu0 %587
    %589 = vrot.lane.b32.xlu0 %v529, 127
    %v590 = vpop.permute.xlu0 %589
    %591 = vrot.lane.b32.xlu0 %v530, 127
    %v592 = vpop.permute.xlu0 %591
    %593 = vrot.lane.b32.xlu0 %v531, 127
    %v594 = vpop.permute.xlu0 %593
    %595 = vrot.lane.b32.xlu0 %v532, 127
    %v596 = vpop.permute.xlu0 %595
    %v605 = vsel %vm92, %v582, 0.0
    %v606 = vsel %vm92, %v584, 0.0
    %v607 = vsel %vm92, %v586, 0.0
    %v608 = vsel %vm92, %v588, 0.0
    %v609 = vsel %vm92, %v590, 0.0
    %v610 = vsel %vm92, %v592, 0.0
    %v611 = vsel %vm92, %v594, 0.0
    %v612 = vsel %vm92, %v596, 0.0
    %v613 = vmul.f32 %v605, %v48
    %v614 = vmul.f32 %v606, %v48
    %v615 = vmul.f32 %v607, %v48
    %v616 = vmul.f32 %v608, %v48
    %v617 = vmul.f32 %v609, %v48
    %v618 = vmul.f32 %v610, %v48
    %v619 = vmul.f32 %v611, %v48
    %v620 = vmul.f32 %v612, %v48
    %v621 = vld [vmem:[%s2 + $0x140] sm:$0xff]
    %v622 = vld [vmem:[%s2 + $0x148] sm:$0xff]
    %v623 = vld [vmem:[%s2 + $0x150] sm:$0xff]
    %v624 = vld [vmem:[%s2 + $0x158] sm:$0xff]
    %v625 = vld [vmem:[%s2 + $0x160] sm:$0xff]
    %v626 = vld [vmem:[%s2 + $0x168] sm:$0xff]
    %v627 = vld [vmem:[%s2 + $0x170] sm:$0xff]
    %v628 = vld [vmem:[%s2 + $0x178] sm:$0xff]
    %v629 = vld [vmem:[%s2 + $0x180] sm:$0xff]
    %v630 = vld [vmem:[%s2 + $0x188] sm:$0xff]
    %v631 = vld [vmem:[%s2 + $0x190] sm:$0xff]
    %v632 = vld [vmem:[%s2 + $0x198] sm:$0xff]
    %v633 = vld [vmem:[%s2 + $0x1a0] sm:$0xff]
    %v634 = vld [vmem:[%s2 + $0x1a8] sm:$0xff]
    %v635 = vld [vmem:[%s2 + $0x1b0] sm:$0xff]
    %v636 = vld [vmem:[%s2 + $0x1b8] sm:$0xff]
    %vm637 = vcmask 588800
    %v639 = vsel %vm637, %v622, 0
    %v642 = vsel %vm637, %v624, 0
    %v645 = vsel %vm637, %v626, 0
    %v648 = vsel %vm637, %v628, 0
    %v651 = vsel %vm637, %v630, 0
    %v654 = vsel %vm637, %v632, 0
    %v657 = vsel %vm637, %v634, 0
    %v660 = vsel %vm637, %v636, 0
    %662 = vmatpush.msra.mxu0 %v532
    %663 = vmatpush.msra.mxu0 %v531
    %664 = vmatpush.msra.mxu0 %v530
    %665 = vmatpush.msra.mxu0 %v529
    %666 = vmatpush.msra.mxu0 %v528
    %667 = vmatpush.msra.mxu0 %v527
    %668 = vmatpush.msra.mxu0 %v526
    %669 = vmatpush.msra.mxu0 %v525
    %670 = vmatpush.msra.mxu0 %v580
    %671 = vmatpush.msra.mxu0 %v579
    %672 = vmatpush.msra.mxu0 %v578
    %673 = vmatpush.msra.mxu0 %v577
    %674 = vmatpush.msra.mxu0 %v576
    %675 = vmatpush.msra.mxu0 %v575
    %676 = vmatpush.msra.mxu0 %v574
    %677 = vmatpush.msra.mxu0 %v573
    %678 = vmatmul.f32.gmra.mxu0 %v621
    %v679 = vpop.f32.mrf.mxu0
    %v680 = vadd.f32 %v385, %v679
    %681 = vmatmul.f32.gmra.mxu0 %v623
    %v682 = vpop.f32.mrf.mxu0
    %v683 = vadd.f32 %v388, %v682
    %684 = vmatmul.f32.gmra.mxu0 %v625
    %v685 = vpop.f32.mrf.mxu0
    %v686 = vadd.f32 %v391, %v685
    %687 = vmatmul.f32.gmra.mxu0 %v627
    %v688 = vpop.f32.mrf.mxu0
    %v689 = vadd.f32 %v394, %v688
    %690 = vmatmul.f32.gmra.mxu0 %v629
    %v691 = vpop.f32.mrf.mxu0
    %v692 = vadd.f32 %v397, %v691
    %693 = vmatmul.f32.gmra.mxu0 %v631
    %v694 = vpop.f32.mrf.mxu0
    %v695 = vadd.f32 %v400, %v694
    %696 = vmatmul.f32.gmra.mxu0 %v633
    %v697 = vpop.f32.mrf.mxu0
    %v698 = vadd.f32 %v403, %v697
    %699 = vmatmul.f32.gmra.mxu0 %v635
    %v700 = vpop.f32.mrf.mxu0
    %v701 = vadd.f32 %v406, %v700
    %702 = vdwg.mxu0
    %703 = vmatpush.msra.mxu0 0.0
    %704 = vmatpush.msra.mxu0 0.0
    %705 = vmatpush.msra.mxu0 0.0
    %706 = vmatpush.msra.mxu0 0.0
    %707 = vmatpush.msra.mxu0 0.0
    %708 = vmatpush.msra.mxu0 0.0
    %709 = vmatpush.msra.mxu0 0.0
    %710 = vmatpush.msra.mxu0 1.0
    %711 = vmatpush.msra.mxu0 %v620
    %712 = vmatpush.msra.mxu0 %v619
    %713 = vmatpush.msra.mxu0 %v618
    %714 = vmatpush.msra.mxu0 %v617
    %715 = vmatpush.msra.mxu0 %v616
    %716 = vmatpush.msra.mxu0 %v615
    %717 = vmatpush.msra.mxu0 %v614
    %718 = vmatpush.msra.mxu0 %v613
    %719 = vmatmul.f32.gmra.mxu0 %v639
    %v720 = vpop.f32.mrf.mxu0
    %v721 = vadd.f32 %v680, %v720
    %722 = vmatmul.f32.gmra.mxu0 %v642
    %v723 = vpop.f32.mrf.mxu0
    %v724 = vadd.f32 %v683, %v723
    %725 = vmatmul.f32.gmra.mxu0 %v645
    %v726 = vpop.f32.mrf.mxu0
    %v727 = vadd.f32 %v686, %v726
    %728 = vmatmul.f32.gmra.mxu0 %v648
    %v729 = vpop.f32.mrf.mxu0
    %v730 = vadd.f32 %v689, %v729
    %731 = vmatmul.f32.gmra.mxu0 %v651
    %v732 = vpop.f32.mrf.mxu0
    %v733 = vadd.f32 %v692, %v732
    %734 = vmatmul.f32.gmra.mxu0 %v654
    %v735 = vpop.f32.mrf.mxu0
    %v736 = vadd.f32 %v695, %v735
    %737 = vmatmul.f32.gmra.mxu0 %v657
    %v738 = vpop.f32.mrf.mxu0
    %v739 = vadd.f32 %v698, %v738
    %740 = vmatmul.f32.gmra.mxu0 %v660
    %v741 = vpop.f32.mrf.mxu0
    %v742 = vadd.f32 %v701, %v741
    %743 = vdwg.mxu0
    %v744 = vmax.f32 %v721, 0.0
    %v745 = vmax.f32 %v724, 0.0
    %v746 = vmax.f32 %v727, 0.0
    %v747 = vmax.f32 %v730, 0.0
    %v748 = vmax.f32 %v733, 0.0
    %v749 = vmax.f32 %v736, 0.0
    %v750 = vmax.f32 %v739, 0.0
    %v751 = vmax.f32 %v742, 0.0
    %760 = vrot.lane.b32.xlu0 %v744, 1
    %v761 = vpop.permute.xlu0 %760
    %762 = vrot.lane.b32.xlu0 %v745, 1
    %v763 = vpop.permute.xlu0 %762
    %764 = vrot.lane.b32.xlu0 %v746, 1
    %v765 = vpop.permute.xlu0 %764
    %766 = vrot.lane.b32.xlu0 %v747, 1
    %v767 = vpop.permute.xlu0 %766
    %768 = vrot.lane.b32.xlu0 %v748, 1
    %v769 = vpop.permute.xlu0 %768
    %770 = vrot.lane.b32.xlu0 %v749, 1
    %v771 = vpop.permute.xlu0 %770
    %772 = vrot.lane.b32.xlu0 %v750, 1
    %v773 = vpop.permute.xlu0 %772
    %774 = vrot.lane.b32.xlu0 %v751, 1
    %v775 = vpop.permute.xlu0 %774
    %v784 = vsel %vm81, 0.0, %v761
    %v785 = vsel %vm81, 0.0, %v763
    %v786 = vsel %vm81, 0.0, %v765
    %v787 = vsel %vm81, 0.0, %v767
    %v788 = vsel %vm81, 0.0, %v769
    %v789 = vsel %vm81, 0.0, %v771
    %v790 = vsel %vm81, 0.0, %v773
    %v791 = vsel %vm81, 0.0, %v775
    %v792 = vmul.f32 %v784, %v42
    %v793 = vmul.f32 %v785, %v42
    %v794 = vmul.f32 %v786, %v42
    %v795 = vmul.f32 %v787, %v42
    %v796 = vmul.f32 %v788, %v42
    %v797 = vmul.f32 %v789, %v42
    %v798 = vmul.f32 %v790, %v42
    %v799 = vmul.f32 %v791, %v42
    %800 = vrot.lane.b32.xlu0 %v744, 127
    %v801 = vpop.permute.xlu0 %800
    %802 = vrot.lane.b32.xlu0 %v745, 127
    %v803 = vpop.permute.xlu0 %802
    %804 = vrot.lane.b32.xlu0 %v746, 127
    %v805 = vpop.permute.xlu0 %804
    %806 = vrot.lane.b32.xlu0 %v747, 127
    %v807 = vpop.permute.xlu0 %806
    %808 = vrot.lane.b32.xlu0 %v748, 127
    %v809 = vpop.permute.xlu0 %808
    %810 = vrot.lane.b32.xlu0 %v749, 127
    %v811 = vpop.permute.xlu0 %810
    %812 = vrot.lane.b32.xlu0 %v750, 127
    %v813 = vpop.permute.xlu0 %812
    %814 = vrot.lane.b32.xlu0 %v751, 127
    %v815 = vpop.permute.xlu0 %814
    %v824 = vsel %vm92, %v801, 0.0
    %v825 = vsel %vm92, %v803, 0.0
    %v826 = vsel %vm92, %v805, 0.0
    %v827 = vsel %vm92, %v807, 0.0
    %v828 = vsel %vm92, %v809, 0.0
    %v829 = vsel %vm92, %v811, 0.0
    %v830 = vsel %vm92, %v813, 0.0
    %v831 = vsel %vm92, %v815, 0.0
    %v832 = vmul.f32 %v824, %v48
    %v833 = vmul.f32 %v825, %v48
    %v834 = vmul.f32 %v826, %v48
    %v835 = vmul.f32 %v827, %v48
    %v836 = vmul.f32 %v828, %v48
    %v837 = vmul.f32 %v829, %v48
    %v838 = vmul.f32 %v830, %v48
    %v839 = vmul.f32 %v831, %v48
    %v840 = vld [vmem:[%s2 + $0x240] sm:$0xff]
    %v841 = vld [vmem:[%s2 + $0x248] sm:$0xff]
    %v842 = vld [vmem:[%s2 + $0x250] sm:$0xff]
    %v843 = vld [vmem:[%s2 + $0x258] sm:$0xff]
    %v844 = vld [vmem:[%s2 + $0x260] sm:$0xff]
    %v845 = vld [vmem:[%s2 + $0x268] sm:$0xff]
    %v846 = vld [vmem:[%s2 + $0x270] sm:$0xff]
    %v847 = vld [vmem:[%s2 + $0x278] sm:$0xff]
    %v848 = vld [vmem:[%s2 + $0x280] sm:$0xff]
    %v849 = vld [vmem:[%s2 + $0x288] sm:$0xff]
    %v850 = vld [vmem:[%s2 + $0x290] sm:$0xff]
    %v851 = vld [vmem:[%s2 + $0x298] sm:$0xff]
    %v852 = vld [vmem:[%s2 + $0x2a0] sm:$0xff]
    %v853 = vld [vmem:[%s2 + $0x2a8] sm:$0xff]
    %v854 = vld [vmem:[%s2 + $0x2b0] sm:$0xff]
    %v855 = vld [vmem:[%s2 + $0x2b8] sm:$0xff]
    %v857 = vsel %vm637, %v841, 0
    %v860 = vsel %vm637, %v843, 0
    %v863 = vsel %vm637, %v845, 0
    %v866 = vsel %vm637, %v847, 0
    %v869 = vsel %vm637, %v849, 0
    %v872 = vsel %vm637, %v851, 0
    %v875 = vsel %vm637, %v853, 0
    %v878 = vsel %vm637, %v855, 0
    %880 = vmatpush.msra.mxu0 %v751
    %881 = vmatpush.msra.mxu0 %v750
    %882 = vmatpush.msra.mxu0 %v749
    %883 = vmatpush.msra.mxu0 %v748
    %884 = vmatpush.msra.mxu0 %v747
    %885 = vmatpush.msra.mxu0 %v746
    %886 = vmatpush.msra.mxu0 %v745
    %887 = vmatpush.msra.mxu0 %v744
    %888 = vmatpush.msra.mxu0 %v799
    %889 = vmatpush.msra.mxu0 %v798
    %890 = vmatpush.msra.mxu0 %v797
    %891 = vmatpush.msra.mxu0 %v796
    %892 = vmatpush.msra.mxu0 %v795
    %893 = vmatpush.msra.mxu0 %v794
    %894 = vmatpush.msra.mxu0 %v793
    %895 = vmatpush.msra.mxu0 %v792
    %896 = vmatmul.f32.gmra.mxu0 %v840
    %v897 = vpop.f32.mrf.mxu0
    %v898 = vadd.f32 0.0, %v897
    %899 = vmatmul.f32.gmra.mxu0 %v842
    %v900 = vpop.f32.mrf.mxu0
    %v901 = vadd.f32 0.0, %v900
    %902 = vmatmul.f32.gmra.mxu0 %v844
    %v903 = vpop.f32.mrf.mxu0
    %v904 = vadd.f32 0.0, %v903
    %905 = vmatmul.f32.gmra.mxu0 %v846
    %v906 = vpop.f32.mrf.mxu0
    %v907 = vadd.f32 0.0, %v906
    %908 = vmatmul.f32.gmra.mxu0 %v848
    %v909 = vpop.f32.mrf.mxu0
    %v910 = vadd.f32 0.0, %v909
    %911 = vmatmul.f32.gmra.mxu0 %v850
    %v912 = vpop.f32.mrf.mxu0
    %v913 = vadd.f32 0.0, %v912
    %914 = vmatmul.f32.gmra.mxu0 %v852
    %v915 = vpop.f32.mrf.mxu0
    %v916 = vadd.f32 0.0, %v915
    %917 = vmatmul.f32.gmra.mxu0 %v854
    %v918 = vpop.f32.mrf.mxu0
    %v919 = vadd.f32 0.0, %v918
    %920 = vdwg.mxu0
    %921 = vmatpush.msra.mxu0 0.0
    %922 = vmatpush.msra.mxu0 0.0
    %923 = vmatpush.msra.mxu0 0.0
    %924 = vmatpush.msra.mxu0 0.0
    %925 = vmatpush.msra.mxu0 0.0
    %926 = vmatpush.msra.mxu0 0.0
    %927 = vmatpush.msra.mxu0 0.0
    %928 = vmatpush.msra.mxu0 1.0
    %929 = vmatpush.msra.mxu0 %v839
    %930 = vmatpush.msra.mxu0 %v838
    %931 = vmatpush.msra.mxu0 %v837
    %932 = vmatpush.msra.mxu0 %v836
    %933 = vmatpush.msra.mxu0 %v835
    %934 = vmatpush.msra.mxu0 %v834
    %935 = vmatpush.msra.mxu0 %v833
    %936 = vmatpush.msra.mxu0 %v832
    %937 = vmatmul.f32.gmra.mxu0 %v857
    %v938 = vpop.f32.mrf.mxu0
    %v939 = vadd.f32 %v898, %v938
    %940 = vmatmul.f32.gmra.mxu0 %v860
    %v941 = vpop.f32.mrf.mxu0
    %v942 = vadd.f32 %v901, %v941
    %943 = vmatmul.f32.gmra.mxu0 %v863
    %v944 = vpop.f32.mrf.mxu0
    %v945 = vadd.f32 %v904, %v944
    %946 = vmatmul.f32.gmra.mxu0 %v866
    %v947 = vpop.f32.mrf.mxu0
    %v948 = vadd.f32 %v907, %v947
    %949 = vmatmul.f32.gmra.mxu0 %v869
    %v950 = vpop.f32.mrf.mxu0
    %v951 = vadd.f32 %v910, %v950
    %952 = vmatmul.f32.gmra.mxu0 %v872
    %v953 = vpop.f32.mrf.mxu0
    %v954 = vadd.f32 %v913, %v953
    %955 = vmatmul.f32.gmra.mxu0 %v875
    %v956 = vpop.f32.mrf.mxu0
    %v957 = vadd.f32 %v916, %v956
    %958 = vmatmul.f32.gmra.mxu0 %v878
    %v959 = vpop.f32.mrf.mxu0
    %v960 = vadd.f32 %v919, %v959
    %961 = vdwg.mxu0
    %v962 = vmax.f32 %v939, 0.0
    %v963 = vmax.f32 %v942, 0.0
    %v964 = vmax.f32 %v945, 0.0
    %v965 = vmax.f32 %v948, 0.0
    %v966 = vmax.f32 %v951, 0.0
    %v967 = vmax.f32 %v954, 0.0
    %v968 = vmax.f32 %v957, 0.0
    %v969 = vmax.f32 %v960, 0.0
    %978 = vrot.lane.b32.xlu0 %v962, 1
    %v979 = vpop.permute.xlu0 %978
    %980 = vrot.lane.b32.xlu0 %v963, 1
    %v981 = vpop.permute.xlu0 %980
    %982 = vrot.lane.b32.xlu0 %v964, 1
    %v983 = vpop.permute.xlu0 %982
    %984 = vrot.lane.b32.xlu0 %v965, 1
    %v985 = vpop.permute.xlu0 %984
    %986 = vrot.lane.b32.xlu0 %v966, 1
    %v987 = vpop.permute.xlu0 %986
    %988 = vrot.lane.b32.xlu0 %v967, 1
    %v989 = vpop.permute.xlu0 %988
    %990 = vrot.lane.b32.xlu0 %v968, 1
    %v991 = vpop.permute.xlu0 %990
    %992 = vrot.lane.b32.xlu0 %v969, 1
    %v993 = vpop.permute.xlu0 %992
    %v1002 = vsel %vm81, 0.0, %v979
    %v1003 = vsel %vm81, 0.0, %v981
    %v1004 = vsel %vm81, 0.0, %v983
    %v1005 = vsel %vm81, 0.0, %v985
    %v1006 = vsel %vm81, 0.0, %v987
    %v1007 = vsel %vm81, 0.0, %v989
    %v1008 = vsel %vm81, 0.0, %v991
    %v1009 = vsel %vm81, 0.0, %v993
    %v1010 = vmul.f32 %v1002, %v42
    %v1011 = vmul.f32 %v1003, %v42
    %v1012 = vmul.f32 %v1004, %v42
    %v1013 = vmul.f32 %v1005, %v42
    %v1014 = vmul.f32 %v1006, %v42
    %v1015 = vmul.f32 %v1007, %v42
    %v1016 = vmul.f32 %v1008, %v42
    %v1017 = vmul.f32 %v1009, %v42
    %1018 = vrot.lane.b32.xlu0 %v962, 127
    %v1019 = vpop.permute.xlu0 %1018
    %1020 = vrot.lane.b32.xlu0 %v963, 127
    %v1021 = vpop.permute.xlu0 %1020
    %1022 = vrot.lane.b32.xlu0 %v964, 127
    %v1023 = vpop.permute.xlu0 %1022
    %1024 = vrot.lane.b32.xlu0 %v965, 127
    %v1025 = vpop.permute.xlu0 %1024
    %1026 = vrot.lane.b32.xlu0 %v966, 127
    %v1027 = vpop.permute.xlu0 %1026
    %1028 = vrot.lane.b32.xlu0 %v967, 127
    %v1029 = vpop.permute.xlu0 %1028
    %1030 = vrot.lane.b32.xlu0 %v968, 127
    %v1031 = vpop.permute.xlu0 %1030
    %1032 = vrot.lane.b32.xlu0 %v969, 127
    %v1033 = vpop.permute.xlu0 %1032
    %v1042 = vsel %vm92, %v1019, 0.0
    %v1043 = vsel %vm92, %v1021, 0.0
    %v1044 = vsel %vm92, %v1023, 0.0
    %v1045 = vsel %vm92, %v1025, 0.0
    %v1046 = vsel %vm92, %v1027, 0.0
    %v1047 = vsel %vm92, %v1029, 0.0
    %v1048 = vsel %vm92, %v1031, 0.0
    %v1049 = vsel %vm92, %v1033, 0.0
    %v1050 = vmul.f32 %v1042, %v48
    %v1051 = vmul.f32 %v1043, %v48
    %v1052 = vmul.f32 %v1044, %v48
    %v1053 = vmul.f32 %v1045, %v48
    %v1054 = vmul.f32 %v1046, %v48
    %v1055 = vmul.f32 %v1047, %v48
    %v1056 = vmul.f32 %v1048, %v48
    %v1057 = vmul.f32 %v1049, %v48
    %v1058 = vld [vmem:[%s2 + $0x2c0] sm:$0xff]
    %v1059 = vld [vmem:[%s2 + $0x2c8] sm:$0xff]
    %v1060 = vld [vmem:[%s2 + $0x2d0] sm:$0xff]
    %v1061 = vld [vmem:[%s2 + $0x2d8] sm:$0xff]
    %v1062 = vld [vmem:[%s2 + $0x2e0] sm:$0xff]
    %v1063 = vld [vmem:[%s2 + $0x2e8] sm:$0xff]
    %v1064 = vld [vmem:[%s2 + $0x2f0] sm:$0xff]
    %v1065 = vld [vmem:[%s2 + $0x2f8] sm:$0xff]
    %v1066 = vld [vmem:[%s2 + $0x300] sm:$0xff]
    %v1067 = vld [vmem:[%s2 + $0x308] sm:$0xff]
    %v1068 = vld [vmem:[%s2 + $0x310] sm:$0xff]
    %v1069 = vld [vmem:[%s2 + $0x318] sm:$0xff]
    %v1070 = vld [vmem:[%s2 + $0x320] sm:$0xff]
    %v1071 = vld [vmem:[%s2 + $0x328] sm:$0xff]
    %v1072 = vld [vmem:[%s2 + $0x330] sm:$0xff]
    %v1073 = vld [vmem:[%s2 + $0x338] sm:$0xff]
    %v1075 = vsel %vm637, %v1059, 0
    %v1078 = vsel %vm637, %v1061, 0
    %v1081 = vsel %vm637, %v1063, 0
    %v1084 = vsel %vm637, %v1065, 0
    %v1087 = vsel %vm637, %v1067, 0
    %v1090 = vsel %vm637, %v1069, 0
    %v1093 = vsel %vm637, %v1071, 0
    %v1096 = vsel %vm637, %v1073, 0
    %1098 = vmatpush.msra.mxu0 %v969
    %1099 = vmatpush.msra.mxu0 %v968
    %1100 = vmatpush.msra.mxu0 %v967
    %1101 = vmatpush.msra.mxu0 %v966
    %1102 = vmatpush.msra.mxu0 %v965
    %1103 = vmatpush.msra.mxu0 %v964
    %1104 = vmatpush.msra.mxu0 %v963
    %1105 = vmatpush.msra.mxu0 %v962
    %1106 = vmatpush.msra.mxu0 %v1017
    %1107 = vmatpush.msra.mxu0 %v1016
    %1108 = vmatpush.msra.mxu0 %v1015
    %1109 = vmatpush.msra.mxu0 %v1014
    %1110 = vmatpush.msra.mxu0 %v1013
    %1111 = vmatpush.msra.mxu0 %v1012
    %1112 = vmatpush.msra.mxu0 %v1011
    %1113 = vmatpush.msra.mxu0 %v1010
    %1114 = vmatmul.f32.gmra.mxu0 %v1058
    %v1115 = vpop.f32.mrf.mxu0
    %v1116 = vadd.f32 %v744, %v1115
    %1117 = vmatmul.f32.gmra.mxu0 %v1060
    %v1118 = vpop.f32.mrf.mxu0
    %v1119 = vadd.f32 %v745, %v1118
    %1120 = vmatmul.f32.gmra.mxu0 %v1062
    %v1121 = vpop.f32.mrf.mxu0
    %v1122 = vadd.f32 %v746, %v1121
    %1123 = vmatmul.f32.gmra.mxu0 %v1064
    %v1124 = vpop.f32.mrf.mxu0
    %v1125 = vadd.f32 %v747, %v1124
    %1126 = vmatmul.f32.gmra.mxu0 %v1066
    %v1127 = vpop.f32.mrf.mxu0
    %v1128 = vadd.f32 %v748, %v1127
    %1129 = vmatmul.f32.gmra.mxu0 %v1068
    %v1130 = vpop.f32.mrf.mxu0
    %v1131 = vadd.f32 %v749, %v1130
    %1132 = vmatmul.f32.gmra.mxu0 %v1070
    %v1133 = vpop.f32.mrf.mxu0
    %v1134 = vadd.f32 %v750, %v1133
    %1135 = vmatmul.f32.gmra.mxu0 %v1072
    %v1136 = vpop.f32.mrf.mxu0
    %v1137 = vadd.f32 %v751, %v1136
    %1138 = vdwg.mxu0
    %1139 = vmatpush.msra.mxu0 0.0
    %1140 = vmatpush.msra.mxu0 0.0
    %1141 = vmatpush.msra.mxu0 0.0
    %1142 = vmatpush.msra.mxu0 0.0
    %1143 = vmatpush.msra.mxu0 0.0
    %1144 = vmatpush.msra.mxu0 0.0
    %1145 = vmatpush.msra.mxu0 0.0
    %1146 = vmatpush.msra.mxu0 1.0
    %1147 = vmatpush.msra.mxu0 %v1057
    %1148 = vmatpush.msra.mxu0 %v1056
    %1149 = vmatpush.msra.mxu0 %v1055
    %1150 = vmatpush.msra.mxu0 %v1054
    %1151 = vmatpush.msra.mxu0 %v1053
    %1152 = vmatpush.msra.mxu0 %v1052
    %1153 = vmatpush.msra.mxu0 %v1051
    %1154 = vmatpush.msra.mxu0 %v1050
    %1155 = vmatmul.f32.gmra.mxu0 %v1075
    %v1156 = vpop.f32.mrf.mxu0
    %v1157 = vadd.f32 %v1116, %v1156
    %1158 = vmatmul.f32.gmra.mxu0 %v1078
    %v1159 = vpop.f32.mrf.mxu0
    %v1160 = vadd.f32 %v1119, %v1159
    %1161 = vmatmul.f32.gmra.mxu0 %v1081
    %v1162 = vpop.f32.mrf.mxu0
    %v1163 = vadd.f32 %v1122, %v1162
    %1164 = vmatmul.f32.gmra.mxu0 %v1084
    %v1165 = vpop.f32.mrf.mxu0
    %v1166 = vadd.f32 %v1125, %v1165
    %1167 = vmatmul.f32.gmra.mxu0 %v1087
    %v1168 = vpop.f32.mrf.mxu0
    %v1169 = vadd.f32 %v1128, %v1168
    %1170 = vmatmul.f32.gmra.mxu0 %v1090
    %v1171 = vpop.f32.mrf.mxu0
    %v1172 = vadd.f32 %v1131, %v1171
    %1173 = vmatmul.f32.gmra.mxu0 %v1093
    %v1174 = vpop.f32.mrf.mxu0
    %v1175 = vadd.f32 %v1134, %v1174
    %1176 = vmatmul.f32.gmra.mxu0 %v1096
    %v1177 = vpop.f32.mrf.mxu0
    %v1178 = vadd.f32 %v1137, %v1177
    %1179 = vdwg.mxu0
    %v1180 = vmax.f32 %v1157, 0.0
    %v1181 = vmax.f32 %v1160, 0.0
    %v1182 = vmax.f32 %v1163, 0.0
    %v1183 = vmax.f32 %v1166, 0.0
    %v1184 = vmax.f32 %v1169, 0.0
    %v1185 = vmax.f32 %v1172, 0.0
    %v1186 = vmax.f32 %v1175, 0.0
    %v1187 = vmax.f32 %v1178, 0.0
    %1196 = vrot.lane.b32.xlu0 %v1180, 1
    %v1197 = vpop.permute.xlu0 %1196
    %1198 = vrot.lane.b32.xlu0 %v1181, 1
    %v1199 = vpop.permute.xlu0 %1198
    %1200 = vrot.lane.b32.xlu0 %v1182, 1
    %v1201 = vpop.permute.xlu0 %1200
    %1202 = vrot.lane.b32.xlu0 %v1183, 1
    %v1203 = vpop.permute.xlu0 %1202
    %1204 = vrot.lane.b32.xlu0 %v1184, 1
    %v1205 = vpop.permute.xlu0 %1204
    %1206 = vrot.lane.b32.xlu0 %v1185, 1
    %v1207 = vpop.permute.xlu0 %1206
    %1208 = vrot.lane.b32.xlu0 %v1186, 1
    %v1209 = vpop.permute.xlu0 %1208
    %1210 = vrot.lane.b32.xlu0 %v1187, 1
    %v1211 = vpop.permute.xlu0 %1210
    %v1220 = vsel %vm81, 0.0, %v1197
    %v1221 = vsel %vm81, 0.0, %v1199
    %v1222 = vsel %vm81, 0.0, %v1201
    %v1223 = vsel %vm81, 0.0, %v1203
    %v1224 = vsel %vm81, 0.0, %v1205
    %v1225 = vsel %vm81, 0.0, %v1207
    %v1226 = vsel %vm81, 0.0, %v1209
    %v1227 = vsel %vm81, 0.0, %v1211
    %v1228 = vmul.f32 %v1220, %v42
    %v1229 = vmul.f32 %v1221, %v42
    %v1230 = vmul.f32 %v1222, %v42
    %v1231 = vmul.f32 %v1223, %v42
    %v1232 = vmul.f32 %v1224, %v42
    %v1233 = vmul.f32 %v1225, %v42
    %v1234 = vmul.f32 %v1226, %v42
    %v1235 = vmul.f32 %v1227, %v42
    %1236 = vrot.lane.b32.xlu0 %v1180, 127
    %v1237 = vpop.permute.xlu0 %1236
    %1238 = vrot.lane.b32.xlu0 %v1181, 127
    %v1239 = vpop.permute.xlu0 %1238
    %1240 = vrot.lane.b32.xlu0 %v1182, 127
    %v1241 = vpop.permute.xlu0 %1240
    %1242 = vrot.lane.b32.xlu0 %v1183, 127
    %v1243 = vpop.permute.xlu0 %1242
    %1244 = vrot.lane.b32.xlu0 %v1184, 127
    %v1245 = vpop.permute.xlu0 %1244
    %1246 = vrot.lane.b32.xlu0 %v1185, 127
    %v1247 = vpop.permute.xlu0 %1246
    %1248 = vrot.lane.b32.xlu0 %v1186, 127
    %v1249 = vpop.permute.xlu0 %1248
    %1250 = vrot.lane.b32.xlu0 %v1187, 127
    %v1251 = vpop.permute.xlu0 %1250
    %v1260 = vsel %vm92, %v1237, 0.0
    %v1261 = vsel %vm92, %v1239, 0.0
    %v1262 = vsel %vm92, %v1241, 0.0
    %v1263 = vsel %vm92, %v1243, 0.0
    %v1264 = vsel %vm92, %v1245, 0.0
    %v1265 = vsel %vm92, %v1247, 0.0
    %v1266 = vsel %vm92, %v1249, 0.0
    %v1267 = vsel %vm92, %v1251, 0.0
    %v1268 = vmul.f32 %v1260, %v48
    %v1269 = vmul.f32 %v1261, %v48
    %v1270 = vmul.f32 %v1262, %v48
    %v1271 = vmul.f32 %v1263, %v48
    %v1272 = vmul.f32 %v1264, %v48
    %v1273 = vmul.f32 %v1265, %v48
    %v1274 = vmul.f32 %v1266, %v48
    %v1275 = vmul.f32 %v1267, %v48
    %v1276 = vld [vmem:[%s2 + $0x340] sm:$0xff]
    %v1277 = vld [vmem:[%s2 + $0x348] sm:$0xff]
    %v1279 = vsel %vm637, %v1277, 0
    %1281 = vmatpush.msra.mxu0 %v1187
    %1282 = vmatpush.msra.mxu0 %v1186
    %1283 = vmatpush.msra.mxu0 %v1185
    %1284 = vmatpush.msra.mxu0 %v1184
    %1285 = vmatpush.msra.mxu0 %v1183
    %1286 = vmatpush.msra.mxu0 %v1182
    %1287 = vmatpush.msra.mxu0 %v1181
    %1288 = vmatpush.msra.mxu0 %v1180
    %1289 = vmatpush.msra.mxu0 %v1235
    %1290 = vmatpush.msra.mxu0 %v1234
    %1291 = vmatpush.msra.mxu0 %v1233
    %1292 = vmatpush.msra.mxu0 %v1232
    %1293 = vmatpush.msra.mxu0 %v1231
    %1294 = vmatpush.msra.mxu0 %v1230
    %1295 = vmatpush.msra.mxu0 %v1229
    %1296 = vmatpush.msra.mxu0 %v1228
    %1297 = vmatmul.f32.gmra.mxu0 %v1276
    %v1298 = vpop.f32.mrf.mxu0
    %v1299 = vadd.f32 0.0, %v1298
    %1300 = vdwg.mxu0
    %1301 = vmatpush.msra.mxu0 0.0
    %1302 = vmatpush.msra.mxu0 0.0
    %1303 = vmatpush.msra.mxu0 0.0
    %1304 = vmatpush.msra.mxu0 0.0
    %1305 = vmatpush.msra.mxu0 0.0
    %1306 = vmatpush.msra.mxu0 0.0
    %1307 = vmatpush.msra.mxu0 0.0
    %1308 = vmatpush.msra.mxu0 1.0
    %1309 = vmatpush.msra.mxu0 %v1275
    %1310 = vmatpush.msra.mxu0 %v1274
    %1311 = vmatpush.msra.mxu0 %v1273
    %1312 = vmatpush.msra.mxu0 %v1272
    %1313 = vmatpush.msra.mxu0 %v1271
    %1314 = vmatpush.msra.mxu0 %v1270
    %1315 = vmatpush.msra.mxu0 %v1269
    %1316 = vmatpush.msra.mxu0 %v1268
    %1317 = vmatmul.f32.gmra.mxu0 %v1279
    %v1318 = vpop.f32.mrf.mxu0
    %v1319 = vadd.f32 %v1299, %v1318
    %1320 = vdwg.mxu0
    %v1321 = vmax.f32 %v1319, 0.0
    %v1322 = vstv %s16
    %v1323 = vmul.f32 %v1321, %v1322
    %1325 = vrot.lane.b32.xlu0 %v1323, 2
    %v1326 = vpop.permute.xlu0 %1325
    %vm1328 = vcmask 15360
    %v1329 = vsel %vm1328, 0.0, %v1326
    %v1330 = vmul.f32 %v1329, %v36
    %1331 = vrot.lane.b32.xlu0 %v1323, 1
    %v1332 = vpop.permute.xlu0 %1331
    %v1334 = vsel %vm81, 0.0, %v1332
    %v1335 = vmul.f32 %v1334, %v42
    %1336 = vrot.lane.b32.xlu0 %v1323, 127
    %v1337 = vpop.permute.xlu0 %1336
    %v1339 = vsel %vm92, %v1337, 0.0
    %v1340 = vmul.f32 %v1339, %v48
    %1341 = vrot.lane.b32.xlu0 %v1323, 126
    %v1342 = vpop.permute.xlu0 %1341
    %vm1344 = vcmask 244736
    %v1345 = vsel %vm1344, %v1342, 0.0
    %v1346 = vmul.f32 %v1345, %v54
    %v1347 = vld [vmem:[%s2 + $0x350] sm:$0xff]
    %vm1348 = vcmask 392192
    %v1350 = vsel %vm1348, %v1347, 0
    %1352 = vmatpush.msra.mxu0 0.0
    %1353 = vmatpush.msra.mxu0 0.0
    %1354 = vmatpush.msra.mxu0 0.0
    %1355 = vmatpush.msra.mxu0 0.0
    %1356 = vmatpush.msra.mxu0 0.0
    %1357 = vmatpush.msra.mxu0 0.0
    %1358 = vmatpush.msra.mxu0 0.0
    %1359 = vmatpush.msra.mxu0 0.0
    %1360 = vmatpush.msra.mxu0 0.0
    %1361 = vmatpush.msra.mxu0 0.0
    %1362 = vmatpush.msra.mxu0 1.0
    %1363 = vmatpush.msra.mxu0 %v1346
    %1364 = vmatpush.msra.mxu0 %v1340
    %1365 = vmatpush.msra.mxu0 %v1323
    %1366 = vmatpush.msra.mxu0 %v1335
    %1367 = vmatpush.msra.mxu0 %v1330
    %1368 = vmatmul.f32.gmra.mxu0 %v1350
    %v1369 = vpop.f32.mrf.mxu0
    %v1370 = vadd.f32 0.0, %v1369
    %1371 = vdwg.mxu0
    %v1372 = vmax.f32 %v1370, 0.0
    %1374 = vrot.lane.b32.xlu0 %v1372, 2
    %v1375 = vpop.permute.xlu0 %1374
    %v1377 = vsel %vm1328, 0.0, %v1375
    %v1378 = vmul.f32 %v1377, %v36
    %1379 = vrot.lane.b32.xlu0 %v1372, 1
    %v1380 = vpop.permute.xlu0 %1379
    %v1382 = vsel %vm81, 0.0, %v1380
    %v1383 = vmul.f32 %v1382, %v42
    %1384 = vrot.lane.b32.xlu0 %v1372, 127
    %v1385 = vpop.permute.xlu0 %1384
    %v1387 = vsel %vm92, %v1385, 0.0
    %v1388 = vmul.f32 %v1387, %v48
    %1389 = vrot.lane.b32.xlu0 %v1372, 126
    %v1390 = vpop.permute.xlu0 %1389
    %v1392 = vsel %vm1344, %v1390, 0.0
    %v1393 = vmul.f32 %v1392, %v54
    %v1394 = vld [vmem:[%s2 + $0x360] sm:$0xff]
    %v1396 = vsel %vm1348, %v1394, 0
    %1398 = vmatpush.msra.mxu0 0.0
    %1399 = vmatpush.msra.mxu0 0.0
    %1400 = vmatpush.msra.mxu0 0.0
    %1401 = vmatpush.msra.mxu0 0.0
    %1402 = vmatpush.msra.mxu0 0.0
    %1403 = vmatpush.msra.mxu0 0.0
    %1404 = vmatpush.msra.mxu0 0.0
    %1405 = vmatpush.msra.mxu0 0.0
    %1406 = vmatpush.msra.mxu0 0.0
    %1407 = vmatpush.msra.mxu0 0.0
    %1408 = vmatpush.msra.mxu0 1.0
    %1409 = vmatpush.msra.mxu0 %v1393
    %1410 = vmatpush.msra.mxu0 %v1388
    %1411 = vmatpush.msra.mxu0 %v1372
    %1412 = vmatpush.msra.mxu0 %v1383
    %1413 = vmatpush.msra.mxu0 %v1378
    %1414 = vmatmul.f32.gmra.mxu0 %v1396
    %v1415 = vpop.f32.mrf.mxu0
    %v1416 = vadd.f32 %v1323, %v1415
    %1417 = vdwg.mxu0
    %v1418 = vmax.f32 %v1416, 0.0
    %1420 = vrot.lane.b32.xlu0 %v1418, 2
    %v1421 = vpop.permute.xlu0 %1420
    %v1423 = vsel %vm1328, 0.0, %v1421
    %v1424 = vmul.f32 %v1423, %v36
    %1425 = vrot.lane.b32.xlu0 %v1418, 1
    %v1426 = vpop.permute.xlu0 %1425
    %v1428 = vsel %vm81, 0.0, %v1426
    %v1429 = vmul.f32 %v1428, %v42
    %1430 = vrot.lane.b32.xlu0 %v1418, 127
    %v1431 = vpop.permute.xlu0 %1430
    %v1433 = vsel %vm92, %v1431, 0.0
    %v1434 = vmul.f32 %v1433, %v48
    %1435 = vrot.lane.b32.xlu0 %v1418, 126
    %v1436 = vpop.permute.xlu0 %1435
    %v1438 = vsel %vm1344, %v1436, 0.0
    %v1439 = vmul.f32 %v1438, %v54
    %v1440 = vld [vmem:[%s2 + $0x370] sm:$0xff]
    %v1442 = vsel %vm1348, %v1440, 0
    %1444 = vmatpush.msra.mxu0 0.0
    %1445 = vmatpush.msra.mxu0 0.0
    %1446 = vmatpush.msra.mxu0 0.0
    %1447 = vmatpush.msra.mxu0 0.0
    %1448 = vmatpush.msra.mxu0 0.0
    %1449 = vmatpush.msra.mxu0 0.0
    %1450 = vmatpush.msra.mxu0 0.0
    %1451 = vmatpush.msra.mxu0 0.0
    %1452 = vmatpush.msra.mxu0 0.0
    %1453 = vmatpush.msra.mxu0 0.0
    %1454 = vmatpush.msra.mxu0 1.0
    %1455 = vmatpush.msra.mxu0 %v1439
    %1456 = vmatpush.msra.mxu0 %v1434
    %1457 = vmatpush.msra.mxu0 %v1418
    %1458 = vmatpush.msra.mxu0 %v1429
    %1459 = vmatpush.msra.mxu0 %v1424
    %1460 = vmatmul.f32.gmra.mxu0 %v1442
    %v1461 = vpop.f32.mrf.mxu0
    %v1462 = vadd.f32 0.0, %v1461
    %1463 = vdwg.mxu0
    %v1464 = vmax.f32 %v1462, 0.0
    %1466 = vrot.lane.b32.xlu0 %v1464, 2
    %v1467 = vpop.permute.xlu0 %1466
    %v1469 = vsel %vm1328, 0.0, %v1467
    %v1470 = vmul.f32 %v1469, %v36
    %1471 = vrot.lane.b32.xlu0 %v1464, 1
    %v1472 = vpop.permute.xlu0 %1471
    %v1474 = vsel %vm81, 0.0, %v1472
    %v1475 = vmul.f32 %v1474, %v42
    %1476 = vrot.lane.b32.xlu0 %v1464, 127
    %v1477 = vpop.permute.xlu0 %1476
    %v1479 = vsel %vm92, %v1477, 0.0
    %v1480 = vmul.f32 %v1479, %v48
    %1481 = vrot.lane.b32.xlu0 %v1464, 126
    %v1482 = vpop.permute.xlu0 %1481
    %v1484 = vsel %vm1344, %v1482, 0.0
    %v1485 = vmul.f32 %v1484, %v54
    %v1486 = vld [vmem:[%s2 + $0x380] sm:$0xff]
    %v1488 = vsel %vm1348, %v1486, 0
    %1490 = vmatpush.msra.mxu0 0.0
    %1491 = vmatpush.msra.mxu0 0.0
    %1492 = vmatpush.msra.mxu0 0.0
    %1493 = vmatpush.msra.mxu0 0.0
    %1494 = vmatpush.msra.mxu0 0.0
    %1495 = vmatpush.msra.mxu0 0.0
    %1496 = vmatpush.msra.mxu0 0.0
    %1497 = vmatpush.msra.mxu0 0.0
    %1498 = vmatpush.msra.mxu0 0.0
    %1499 = vmatpush.msra.mxu0 0.0
    %1500 = vmatpush.msra.mxu0 1.0
    %1501 = vmatpush.msra.mxu0 %v1485
    %1502 = vmatpush.msra.mxu0 %v1480
    %1503 = vmatpush.msra.mxu0 %v1464
    %1504 = vmatpush.msra.mxu0 %v1475
    %1505 = vmatpush.msra.mxu0 %v1470
    %1506 = vmatmul.f32.gmra.mxu0 %v1488
    %v1507 = vpop.f32.mrf.mxu0
    %v1508 = vadd.f32 %v1418, %v1507
    %1509 = vdwg.mxu0
    %v1510 = vmax.f32 %v1508, 0.0
    %v1511 = vmul.f32 %v1510, %v1322
    %1512 = vst.msk [vmem:[#allocation3] sm:$0xff] %vm62, %v1511
    %1514 = vrot.lane.b32.xlu0 %v1511, 112
    %v1515 = vpop.permute.xlu0 %1514
    %s1517 = scalar_lea.vmem [#allocation3], 8
    %1518 = vst.msk [vmem:[%s1517] sm:$0xff] %vm62, %v1515
    // Predicated region
    $region14: #{tpu_custom_call.1} parent=1 // pred_check
      _
    $region15: #{tpu_custom_call.1} parent=1 // pred_check_branch
      %1520 = sbr.rel (0) target = $region17
    $region16: #{tpu_custom_call.1} parent=1 // pred_region
      %1522 = vsyncadd [#allocation4], 0
      %s1523 = sshll.u32 [#allocation3], 4
      %s1524 = int_to_ptr.vmem [resolvable:$true] %s1523
      %s1525 = sshll.u32 %s3, 4
      %s1526 = int_to_ptr.hbm [resolvable:$true] %s1525
      %1531 = dma.vmem_to_hbm [thread:$0]  %s1524, 256, %s1526, [#allocation4], 128, 128, 8
    $region17: #{tpu_custom_call.1} parent=1 // pred_fallthru
      _
    // Predicated region
    $region18: #{tpu_custom_call.1} parent=1 // pred_check
      _
    $region19: #{tpu_custom_call.1} parent=1 // pred_check_branch
      %1533 = sbr.rel (0) target = $region21
    $region20: #{tpu_custom_call.1} parent=1 // pred_region
      %1535 = dma.done [#allocation4], 256
    $region21: #{tpu_custom_call.1} parent=1 // pred_fallthru
      _
    %1536 = vsyncpa [#allocation4], 1

</llo_original>
